<compile_context>
chip_gen: v7x
topology: tpu7x:2x2x1
jax: 0.10.0
libtpu: 0.0.40
codegen_flags: <defaults>
</compile_context>

<pallas_src>
import functools
import math

import numpy as np
import jax
import jax.numpy as jnp
from jax import lax
from jax.experimental import pallas as pl
from jax.experimental.pallas import tpu as pltpu


# dimension_numbers for "contract on the last dim of both operands" (A @ B^T),
# the well-supported flash-attention pattern on the MXU.
_TRANS_B = (((1,), (1,)), ((), ()))


def _pick_rows_per_block(NH, row_lanes):
    """Rows-of-windows per grid step.

    Prefers the smallest R dividing NH with L = R*row_lanes a multiple of 128
    (lane-dense block, least masked-Gram waste); falls back to the whole padded
    image (block == full array, which BlockSpec always allows)."""
    for r in range(1, NH + 1):
        if NH % r:
            continue
        lanes = r * row_lanes
        if lanes >= 128 and lanes % 128 == 0:
            return r
    return NH


def _pick_hw_tile(HW):
    for t in (512, 384, 256, 128):
        if HW % t == 0:
            return t
    return HW


# ============================================================================
# Kernel 1 (per window branch): qkv 1x1-conv (MXU) + windowed self-attention
# ============================================================================
def _make_branch_attn_kernel(num_heads, cdim):
    def kernel(x_ref, wq_ref, wvT_ref, bq_ref, bv_ref, widc_ref, widr_ref,
               o_ref):
        # x_ref   : (1, Cin, L)  raster block of the padded+shifted image
        # wq_ref  : (Cin, hq)    q-projection weights      (hq = heads*cdim)
        # wvT_ref : (hq, Cin)    v-projection weights (transposed)
        # bq_ref  : (1, hq), bv_ref: (hq, 1)
        # widc_ref: (L, 1), widr_ref: (1, L)  precomputed window ids
        # o_ref   : (1, hq, L)   attention output, raster layout (lane dense)
        x = x_ref[0]                                            # (Cin, L)
        xT = jnp.transpose(x)                                   # (L, Cin), one XLU transpose/step

        # 1x1 conv as MXU matmuls (one pass over x for all heads/channels).
        qT = jnp.dot(xT, wq_ref[...],
                     preferred_element_type=jnp.float32) + bq_ref[...]   # (L, hq)
        v = jnp.dot(wvT_ref[...], x,
                    preferred_element_type=jnp.float32) + bv_ref[...]    # (hq, L)

        # Block-diagonal same-window mask, shared by all heads.
        mask = widc_ref[...] == widr_ref[...]                   # (L, L) bool

        outs = []
        # num_heads is small (2 here); the heavy per-channel unrolling of the
        # previous version is gone (channels live inside the matmuls).
        for hd in range(num_heads):
            qh = qT[:, hd * cdim:(hd + 1) * cdim]               # (L, cdim)
            vh = v[hd * cdim:(hd + 1) * cdim, :]                # (cdim, L)

            # scores s[i, j] = <q_i, q_j>, cross-window entries masked out.
            s = lax.dot_general(qh, qh, _TRANS_B,
                                preferred_element_type=jnp.float32)       # (L, L)
            s = jnp.where(mask, s, -1e30)

            # per-row safe softmax (lane-axis reductions, fully lane dense)
            m = jnp.max(s, axis=-1, keepdims=True)              # (L, 1)
            e = jnp.exp(s - m)                                  # masked -> 0
            denom = jnp.sum(e, axis=-1, keepdims=True)          # (L, 1)
            p = e * pl.reciprocal(denom)                        # exact recip (EUP) + VPU mul

            # out[c, i] = sum_j v[c, j] * p[i, j]   (MXU, K = L)
            oh = lax.dot_general(vh, p, _TRANS_B,
                                 preferred_element_type=jnp.float32)      # (cdim, L)
            outs.append(oh)

        res = outs[0] if num_heads == 1 else jnp.concatenate(outs, axis=0)
        o_ref[0, :, :] = res.astype(o_ref.dtype)                # one wide store / step

    return kernel


def _branch_attention(x, wq, wvT, bq, bv, *, window, shift, num_heads, cdim):
    """One window branch: pad/roll (XLA), fused conv+attention (Pallas).

    Returns (B, hq, h*w) in plain image-raster layout (already un-shifted and
    cropped)."""
    B, Cin, h, w = x.shape
    ws1, ws2 = window
    NH, NW = math.ceil(h / ws1), math.ceil(w / ws2)
    Hp, Wp = NH * ws1, NW * ws2
    hq = num_heads * cdim

    xb = x
    if Hp != h or Wp != w:
        # reflect-pad commutes with the pointwise qv conv
        xb = jnp.pad(xb, ((0, 0), (0, 0), (0, Hp - h), (0, Wp - w)),
                     mode="reflect")
    if shift != (0, 0):
        # torch.roll(conv(x)) == conv(torch.roll(x)) for a 1x1 conv
        xb = jnp.roll(xb, shift, axis=(2, 3))
    x_flat = xb.reshape(B, Cin, Hp * Wp)                # free raster reshape

    R = _pick_rows_per_block(NH, ws1 * Wp)
    L = R * ws1 * Wp
    NB = NH // R

    # Precomputed window ids (avoids any in-kernel integer div/mod); both
    # layouts are tiny (Hp*Wp int32 each).
    rows = np.arange(Hp)[:, None]
    cols = np.arange(Wp)[None, :]
    wid = ((rows // ws1) * (Wp // ws2) + (cols // ws2)).astype(np.int32)
    wid_flat = wid.reshape(-1)
    wid_col = jnp.asarray(wid_flat.reshape(Hp * Wp, 1))
    wid_row = jnp.asarray(wid_flat.reshape(1, Hp * Wp))

    y = pl.pallas_call(
        _make_branch_attn_kernel(num_heads, cdim),
        out_shape=jax.ShapeDtypeStruct((B, hq, Hp * Wp), x.dtype),
        grid=(B, NB),
        in_specs=[
            pl.BlockSpec((1, Cin, L), lambda b, n: (b, 0, n)),   # x raster block
            pl.BlockSpec((Cin, hq), lambda b, n: (0, 0)),        # Wq
            pl.BlockSpec((hq, Cin), lambda b, n: (0, 0)),        # Wv^T
            pl.BlockSpec((1, hq), lambda b, n: (0, 0)),          # bq
            pl.BlockSpec((hq, 1), lambda b, n: (0, 0)),          # bv
            pl.BlockSpec((L, 1), lambda b, n: (n, 0)),           # window ids (col)
            pl.BlockSpec((1, L), lambda b, n: (0, n)),           # window ids (row)
        ],
        out_specs=pl.BlockSpec((1, hq, L), lambda b, n: (b, 0, n)),
        compiler_params=pltpu.CompilerParams(
            dimension_semantics=("parallel", "parallel")),
    )(x_flat, wq, wvT, bq, bv, wid_col, wid_row)

    # Undo the shift / padding (wrap-around + crop -> tiny XLA ops).
    if shift != (0, 0) or Hp != h or Wp != w:
        img = y.reshape(B, hq, Hp, Wp)
        if shift != (0, 0):
            img = jnp.roll(img, (-shift[0], -shift[1]), axis=(2, 3))
        img = img[:, :, :h, :w]
        y = img.reshape(B, hq, h * w)
    return y


# ============================================================================
# Kernel 2: proj 1x1-conv, single MXU contraction, lane-dense over H*W
# ============================================================================
def _make_proj_kernel(nb):
    def kernel(*refs):
        y_refs = refs[:nb]
        w_ref, b_ref, o_ref = refs[nb], refs[nb + 1], refs[nb + 2]
        if nb > 1:
            ycat = jnp.concatenate([r[0] for r in y_refs], axis=0)   # (nb*hq, T)
        else:
            ycat = y_refs[0][0]
        acc = jnp.dot(w_ref[...], ycat, preferred_element_type=jnp.float32)
        o_ref[0, :, :] = (acc + b_ref[...]).astype(o_ref.dtype)
    return kernel


def sa_base_4d_pallas(x, params, *, num_heads, window_list, shift_list):
    """x: (B, dim, H, W) -> (B, dim, H, W)."""
    B, Cin, h, w = x.shape
    attn_w, attn_b = params["attn_w"], params["attn_b"]
    proj_w, proj_b = params["proj_w"], params["proj_b"]
    nb = len(window_list)
    Cqkv = attn_w.shape[1]
    Cs = Cqkv // nb                 # qkv channels per branch
    hq = Cs // 2                    # = num_heads * cdim
    cdim = hq // num_heads

    ys = []
    for k, (window, shift) in enumerate(zip(window_list, shift_list)):
        wq = attn_w[:, k * Cs: k * Cs + hq]                         # (Cin, hq)
        wvT = jnp.transpose(attn_w[:, k * Cs + hq: (k + 1) * Cs])   # (hq, Cin)
        bq = attn_b[k * Cs: k * Cs + hq].reshape(1, hq)
        bv = attn_b[k * Cs + hq: (k + 1) * Cs].reshape(hq, 1)
        ys.append(_branch_attention(
            x, wq, wvT, bq, bv, window=window, shift=tuple(shift),
            num_heads=num_heads, cdim=cdim))

    dim_out = proj_w.shape[1]
    w_cat = jnp.transpose(proj_w)            # (dim_out, nb*hq)
    b_col = proj_b.reshape(dim_out, 1)
    HW = h * w
    T = _pick_hw_tile(HW)
    NT = HW // T

    in_specs = [pl.BlockSpec((1, hq, T), lambda b, t: (b, 0, t))
                for _ in range(nb)]
    in_specs += [pl.BlockSpec((dim_out, nb * hq), lambda b, t: (0, 0)),
                 pl.BlockSpec((dim_out, 1), lambda b, t: (0, 0))]

    out2d = pl.pallas_call(
        _make_proj_kernel(nb),
        out_shape=jax.ShapeDtypeStruct((B, dim_out, HW), x.dtype),
        grid=(B, NT),
        in_specs=in_specs,
        out_specs=pl.BlockSpec((1, dim_out, T), lambda b, t: (b, 0, t)),
        compiler_params=pltpu.CompilerParams(
            dimension_semantics=("parallel", "parallel")),
    )(*ys, w_cat, b_col)

    return out2d.reshape(B, dim_out, h, w)


# ============================================================================
# Pure-JAX reference (mirrors the PyTorch module) + deterministic params
# ============================================================================
def sa_base_4d_reference(x, params, *, num_heads, window_list, shift_list):
    qkv = jnp.einsum("bchw,cd->bdhw", x, params["attn_w"]) \
        + params["attn_b"][None, :, None, None]
    B, C, h, w = qkv.shape
    nb = len(window_list)
    Cs = C // nb
    outs = []
    for i, (win, shift) in enumerate(zip(window_list, shift_list)):
        sl = qkv[:, i * Cs:(i + 1) * Cs]
        ws1, ws2 = win
        NH, NW = math.ceil(h / ws1), math.ceil(w / ws2)
        ph, pw = NH * ws1 - h, NW * ws2 - w
        if ph or pw:
            sl = jnp.pad(sl, ((0, 0), (0, 0), (0, ph), (0, pw)), mode="reflect")
        if shift != (0, 0):
            sl = jnp.roll(sl, shift, axis=(2, 3))
        H, W = sl.shape[2], sl.shape[3]
        head = num_heads
        cdim = Cs // (2 * head)
        t = sl.reshape(B, 2, head, cdim, NH, ws1, NW, ws2)
        t = jnp.transpose(t, (1, 0, 2, 4, 6, 5, 7, 3))
        t = t.reshape(2, B * head * NH * NW, ws1 * ws2, cdim)
        q, v = t[0], t[1]
        p = jax.nn.softmax(jnp.einsum("nsc,ntc->nst", q, q), axis=-1)
        o = jnp.einsum("nst,ntc->nsc", p, v)
        o = o.reshape(B, head, NH, NW, ws1, ws2, cdim)
        o = jnp.transpose(o, (0, 1, 6, 2, 4, 3, 5)).reshape(B, head * cdim, H, W)
        if shift != (0, 0):
            o = jnp.roll(o, (-shift[0], -shift[1]), axis=(2, 3))
        outs.append(o[:, :, :h, :w])
    out = jnp.concatenate(outs, axis=1)
    out = jnp.einsum("bchw,cd->bdhw", out, params["proj_w"]) \
        + params["proj_b"][None, :, None, None]
    return out


def init_params(key, dim):
    k1, k2, k3, k4 = jax.random.split(key, 4)
    # 1x1 conv weights stored as (Cin, Cout) matrices (== Conv2d weight[:, :, 0, 0].T)
    attn_w = jax.random.normal(k1, (dim, 2 * dim), jnp.float32) * (1.0 / math.sqrt(dim))
    attn_b = jax.random.normal(k2, (2 * dim,), jnp.float32) * 0.01
    proj_w = jax.random.normal(k3, (dim, dim), jnp.float32) * (1.0 / math.sqrt(dim))
    proj_b = jax.random.normal(k4, (dim,), jnp.float32) * 0.01
    return {"attn_w": attn_w, "attn_b": attn_b, "proj_w": proj_w, "proj_b": proj_b}


if __name__ == "__main__":
    dim = 8
    num_heads = 2
    window_list = ((4, 4), (8, 8))
    shift_list = ((0, 0), (2, 2))

    root = jax.random.PRNGKey(0)
    kx, kp = jax.random.split(root)
    x = jax.random.normal(kx, (2, dim, 16, 16), jnp.float32)
    params = init_params(kp, dim)

    fwd = jax.jit(functools.partial(
        sa_base_4d_pallas,
        num_heads=num_heads, window_list=window_list, shift_list=shift_list))
    out = jax.block_until_ready(fwd(x, params))

    ref = jax.block_until_ready(sa_base_4d_reference(
        x, params,
        num_heads=num_heads, window_list=window_list, shift_list=shift_list))

    assert out.shape == (2, dim, 16, 16)
    assert jnp.allclose(out, ref, rtol=1e-2, atol=1e-2), "mismatch vs JAX reference"
    print("KERNEL_OK")
</pallas_src>

<mosaic_0001>
module attributes {stable_mosaic.version = 11 : i64} {
  func.func @kernel(%arg0: i32, %arg1: i32, %arg2: memref<1x8x128xf32, #tpu.memory_space<vmem>>, %arg3: memref<8x4xf32, #tpu.memory_space<vmem>>, %arg4: memref<4x8xf32, #tpu.memory_space<vmem>>, %arg5: memref<1x4xf32, #tpu.memory_space<vmem>>, %arg6: memref<4x1xf32, #tpu.memory_space<vmem>>, %arg7: memref<128x1xi32, #tpu.memory_space<vmem>>, %arg8: memref<1x128xi32, #tpu.memory_space<vmem>>, %arg9: memref<1x4x128xf32, #tpu.memory_space<vmem>>) attributes {dimension_semantics = [#tpu.dimension_semantics<parallel>, #tpu.dimension_semantics<parallel>], iteration_bounds = array<i64: 2, 2>, scalar_prefetch = 0 : i64, scratch_operands = 0 : i64, tpu.core_type = #tpu.core_type<tc>, window_params = [{transform_indices = @transform_0, window_bounds = array<i64: 1, 8, 128>}, {pipeline_mode = #tpu.pipeline_mode<synchronous>, transform_indices = @transform_1, window_bounds = array<i64: 8, 4>}, {pipeline_mode = #tpu.pipeline_mode<synchronous>, transform_indices = @transform_2, window_bounds = array<i64: 4, 8>}, {pipeline_mode = #tpu.pipeline_mode<synchronous>, transform_indices = @transform_3, window_bounds = array<i64: 1, 4>}, {pipeline_mode = #tpu.pipeline_mode<synchronous>, transform_indices = @transform_4, window_bounds = array<i64: 4, 1>}, {transform_indices = @transform_5, window_bounds = array<i64: 128, 1>}, {transform_indices = @transform_6, window_bounds = array<i64: 1, 128>}, {transform_indices = @transform_7, window_bounds = array<i64: 1, 4, 128>}]} {
    %c0 = arith.constant 0 : index
    %c0_0 = arith.constant 0 : index
    %c0_1 = arith.constant 0 : index
    %0 = vector.load %arg2[%c0, %c0_0, %c0_1] : memref<1x8x128xf32, #tpu.memory_space<vmem>>, vector<1x8x128xf32>
    %1 = vector.shape_cast %0 : vector<1x8x128xf32> to vector<8x128xf32>
    %2 = tpu.transpose %1, [1, 0] : vector<8x128xf32> -> vector<128x8xf32>
    %c0_2 = arith.constant 0 : index
    %c0_3 = arith.constant 0 : index
    %3 = vector.load %arg3[%c0_2, %c0_3] : memref<8x4xf32, #tpu.memory_space<vmem>>, vector<8x4xf32>
    %cst = arith.constant dense<0.000000e+00> : vector<128x4xf32>
    %4 = tpu.matmul %2, %3, %cst {dimension_numbers = #tpu.dot_dimension_numbers<[1], [0], [0], [1], [0, 0, 1, 1], [], []>} : vector<128x8xf32>, vector<8x4xf32>, vector<128x4xf32> -> vector<128x4xf32>
    %c0_4 = arith.constant 0 : index
    %c0_5 = arith.constant 0 : index
    %5 = vector.load %arg5[%c0_4, %c0_5] : memref<1x4xf32, #tpu.memory_space<vmem>>, vector<1x4xf32>
    %6 = vector.broadcast %5 : vector<1x4xf32> to vector<128x4xf32>
    %7 = arith.addf %4, %6 : vector<128x4xf32>
    %c0_6 = arith.constant 0 : index
    %c0_7 = arith.constant 0 : index
    %8 = vector.load %arg4[%c0_6, %c0_7] : memref<4x8xf32, #tpu.memory_space<vmem>>, vector<4x8xf32>
    %cst_8 = arith.constant dense<0.000000e+00> : vector<4x128xf32>
    %9 = tpu.matmul %8, %1, %cst_8 {dimension_numbers = #tpu.dot_dimension_numbers<[1], [0], [0], [1], [0, 0, 1, 1], [], []>} : vector<4x8xf32>, vector<8x128xf32>, vector<4x128xf32> -> vector<4x128xf32>
    %c0_9 = arith.constant 0 : index
    %c0_10 = arith.constant 0 : index
    %10 = vector.load %arg6[%c0_9, %c0_10] : memref<4x1xf32, #tpu.memory_space<vmem>>, vector<4x1xf32>
    %11 = vector.broadcast %10 : vector<4x1xf32> to vector<4x128xf32>
    %12 = arith.addf %9, %11 : vector<4x128xf32>
    %c0_11 = arith.constant 0 : index
    %c0_12 = arith.constant 0 : index
    %13 = vector.load %arg7[%c0_11, %c0_12] : memref<128x1xi32, #tpu.memory_space<vmem>>, vector<128x1xi32>
    %c0_13 = arith.constant 0 : index
    %c0_14 = arith.constant 0 : index
    %14 = vector.load %arg8[%c0_13, %c0_14] : memref<1x128xi32, #tpu.memory_space<vmem>>, vector<1x128xi32>
    %15 = vector.broadcast %13 : vector<128x1xi32> to vector<128x128xi32>
    %16 = vector.broadcast %14 : vector<1x128xi32> to vector<128x128xi32>
    %17 = arith.cmpi eq, %15, %16 : vector<128x128xi32>
    %18 = vector.extract_strided_slice %7 {offsets = [0, 0], sizes = [128, 2], strides = [1, 1]} : vector<128x4xf32> to vector<128x2xf32>
    %19 = vector.extract_strided_slice %12 {offsets = [0, 0], sizes = [2, 128], strides = [1, 1]} : vector<4x128xf32> to vector<2x128xf32>
    %cst_15 = arith.constant dense<0.000000e+00> : vector<128x128xf32>
    %20 = tpu.matmul %18, %18, %cst_15 {dimension_numbers = #tpu.dot_dimension_numbers<[1], [1], [0], [0], [0, 0, 1, 0], [], []>} : vector<128x2xf32>, vector<128x2xf32>, vector<128x128xf32> -> vector<128x128xf32>
    %cst_16 = arith.constant -1.000000e+30 : f32
    %21 = vector.broadcast %cst_16 : f32 to vector<128x128xf32>
    %22 = arith.select %17, %20, %21 : vector<128x128xi1>, vector<128x128xf32>
    %cst_17 = arith.constant dense<0xFF800000> : vector<128xf32>
    %23 = vector.multi_reduction <maximumf>, %22, %cst_17 [1] : vector<128x128xf32> to vector<128xf32>
    %24 = vector.shape_cast %23 : vector<128xf32> to vector<128x1xf32>
    %25 = vector.broadcast %24 : vector<128x1xf32> to vector<128x128xf32>
    %26 = arith.subf %22, %25 : vector<128x128xf32>
    %27 = math.exp %26 : vector<128x128xf32>
    %cst_18 = arith.constant dense<0.000000e+00> : vector<128xf32>
    %28 = vector.multi_reduction <add>, %27, %cst_18 [1] : vector<128x128xf32> to vector<128xf32>
    %29 = vector.shape_cast %28 : vector<128xf32> to vector<128x1xf32>
    %30 = tpu.reciprocal %29 : vector<128x1xf32> -> vector<128x1xf32>
    %31 = vector.broadcast %30 : vector<128x1xf32> to vector<128x128xf32>
    %32 = arith.mulf %27, %31 : vector<128x128xf32>
    %cst_19 = arith.constant dense<0.000000e+00> : vector<2x128xf32>
    %33 = tpu.matmul %19, %32, %cst_19 {dimension_numbers = #tpu.dot_dimension_numbers<[1], [1], [0], [0], [0, 0, 1, 0], [], []>} : vector<2x128xf32>, vector<128x128xf32>, vector<2x128xf32> -> vector<2x128xf32>
    %34 = vector.extract_strided_slice %7 {offsets = [0, 2], sizes = [128, 2], strides = [1, 1]} : vector<128x4xf32> to vector<128x2xf32>
    %35 = vector.extract_strided_slice %12 {offsets = [2, 0], sizes = [2, 128], strides = [1, 1]} : vector<4x128xf32> to vector<2x128xf32>
    %cst_20 = arith.constant dense<0.000000e+00> : vector<128x128xf32>
    %36 = tpu.matmul %34, %34, %cst_20 {dimension_numbers = #tpu.dot_dimension_numbers<[1], [1], [0], [0], [0, 0, 1, 0], [], []>} : vector<128x2xf32>, vector<128x2xf32>, vector<128x128xf32> -> vector<128x128xf32>
    %cst_21 = arith.constant -1.000000e+30 : f32
    %37 = vector.broadcast %cst_21 : f32 to vector<128x128xf32>
    %38 = arith.select %17, %36, %37 : vector<128x128xi1>, vector<128x128xf32>
    %cst_22 = arith.constant dense<0xFF800000> : vector<128xf32>
    %39 = vector.multi_reduction <maximumf>, %38, %cst_22 [1] : vector<128x128xf32> to vector<128xf32>
    %40 = vector.shape_cast %39 : vector<128xf32> to vector<128x1xf32>
    %41 = vector.broadcast %40 : vector<128x1xf32> to vector<128x128xf32>
    %42 = arith.subf %38, %41 : vector<128x128xf32>
    %43 = math.exp %42 : vector<128x128xf32>
    %cst_23 = arith.constant dense<0.000000e+00> : vector<128xf32>
    %44 = vector.multi_reduction <add>, %43, %cst_23 [1] : vector<128x128xf32> to vector<128xf32>
    %45 = vector.shape_cast %44 : vector<128xf32> to vector<128x1xf32>
    %46 = tpu.reciprocal %45 : vector<128x1xf32> -> vector<128x1xf32>
    %47 = vector.broadcast %46 : vector<128x1xf32> to vector<128x128xf32>
    %48 = arith.mulf %43, %47 : vector<128x128xf32>
    %cst_24 = arith.constant dense<0.000000e+00> : vector<2x128xf32>
    %49 = tpu.matmul %35, %48, %cst_24 {dimension_numbers = #tpu.dot_dimension_numbers<[1], [1], [0], [0], [0, 0, 1, 0], [], []>} : vector<2x128xf32>, vector<128x128xf32>, vector<2x128xf32> -> vector<2x128xf32>
    %50 = tpu.concatenate %33, %49 in 0 : vector<2x128xf32>, vector<2x128xf32> -> vector<4x128xf32>
    %c0_25 = arith.constant 0 : index
    %c0_26 = arith.constant 0 : index
    %c0_27 = arith.constant 0 : index
    %51 = vector.load %arg9[%c0_25, %c0_26, %c0_27] : memref<1x4x128xf32, #tpu.memory_space<vmem>>, vector<1x4x128xf32>
    %52 = vector.shape_cast %51 : vector<1x4x128xf32> to vector<4x128xf32>
    %53 = vector.shape_cast %50 : vector<4x128xf32> to vector<1x4x128xf32>
    tpu.vector_store %arg9[%c0_25, %c0_26, %c0_27], %53 {strides = array<i32>} : memref<1x4x128xf32, #tpu.memory_space<vmem>>, vector<1x4x128xf32>,
    return
  }
  func.func @transform_0(%arg0: i32, %arg1: i32) -> (i32, i32, i32) {
    %c0_i32 = arith.constant 0 : i32
    %c0_i32_0 = arith.constant 0 : i32
    return %arg0, %c0_i32, %arg1 : i32, i32, i32
  }
  func.func @transform_1(%arg0: i32, %arg1: i32) -> (i32, i32) {
    %c0_i32 = arith.constant 0 : i32
    %c0_i32_0 = arith.constant 0 : i32
    %c0_i32_1 = arith.constant 0 : i32
    return %c0_i32, %c0_i32_0 : i32, i32
  }
  func.func @transform_2(%arg0: i32, %arg1: i32) -> (i32, i32) {
    %c0_i32 = arith.constant 0 : i32
    %c0_i32_0 = arith.constant 0 : i32
    %c0_i32_1 = arith.constant 0 : i32
    return %c0_i32, %c0_i32_0 : i32, i32
  }
  func.func @transform_3(%arg0: i32, %arg1: i32) -> (i32, i32) {
    %c0_i32 = arith.constant 0 : i32
    %c0_i32_0 = arith.constant 0 : i32
    %c0_i32_1 = arith.constant 0 : i32
    return %c0_i32, %c0_i32_0 : i32, i32
  }
  func.func @transform_4(%arg0: i32, %arg1: i32) -> (i32, i32) {
    %c0_i32 = arith.constant 0 : i32
    %c0_i32_0 = arith.constant 0 : i32
    %c0_i32_1 = arith.constant 0 : i32
    return %c0_i32, %c0_i32_0 : i32, i32
  }
  func.func @transform_5(%arg0: i32, %arg1: i32) -> (i32, i32) {
    %c0_i32 = arith.constant 0 : i32
    %c0_i32_0 = arith.constant 0 : i32
    return %arg1, %c0_i32 : i32, i32
  }
  func.func @transform_6(%arg0: i32, %arg1: i32) -> (i32, i32) {
    %c0_i32 = arith.constant 0 : i32
    %c0_i32_0 = arith.constant 0 : i32
    return %c0_i32, %arg1 : i32, i32
  }
  func.func @transform_7(%arg0: i32, %arg1: i32) -> (i32, i32, i32) {
    %c0_i32 = arith.constant 0 : i32
    %c0_i32_0 = arith.constant 0 : i32
    return %arg0, %c0_i32, %arg1 : i32, i32, i32
  }
}

module attributes {stable_mosaic.version = 11 : i64} {
  func.func @kernel(%arg0: i32, %arg1: i32, %arg2: memref<1x4x256xf32, #tpu.memory_space<vmem>>, %arg3: memref<1x4x256xf32, #tpu.memory_space<vmem>>, %arg4: memref<8x8xf32, #tpu.memory_space<vmem>>, %arg5: memref<8x1xf32, #tpu.memory_space<vmem>>, %arg6: memref<1x8x256xf32, #tpu.memory_space<vmem>>) attributes {dimension_semantics = [#tpu.dimension_semantics<parallel>, #tpu.dimension_semantics<parallel>], iteration_bounds = array<i64: 2, 1>, scalar_prefetch = 0 : i64, scratch_operands = 0 : i64, tpu.core_type = #tpu.core_type<tc>, window_params = [{transform_indices = @transform_0, window_bounds = array<i64: 1, 4, 256>}, {transform_indices = @transform_1, window_bounds = array<i64: 1, 4, 256>}, {pipeline_mode = #tpu.pipeline_mode<synchronous>, transform_indices = @transform_2, window_bounds = array<i64: 8, 8>}, {pipeline_mode = #tpu.pipeline_mode<synchronous>, transform_indices = @transform_3, window_bounds = array<i64: 8, 1>}, {transform_indices = @transform_4, window_bounds = array<i64: 1, 8, 256>}]} {
    %c0 = arith.constant 0 : index
    %c0_0 = arith.constant 0 : index
    %c0_1 = arith.constant 0 : index
    %0 = vector.load %arg2[%c0, %c0_0, %c0_1] : memref<1x4x256xf32, #tpu.memory_space<vmem>>, vector<1x4x256xf32>
    %1 = vector.shape_cast %0 : vector<1x4x256xf32> to vector<4x256xf32>
    %c0_2 = arith.constant 0 : index
    %c0_3 = arith.constant 0 : index
    %c0_4 = arith.constant 0 : index
    %2 = vector.load %arg3[%c0_2, %c0_3, %c0_4] : memref<1x4x256xf32, #tpu.memory_space<vmem>>, vector<1x4x256xf32>
    %3 = vector.shape_cast %2 : vector<1x4x256xf32> to vector<4x256xf32>
    %4 = tpu.concatenate %1, %3 in 0 : vector<4x256xf32>, vector<4x256xf32> -> vector<8x256xf32>
    %c0_5 = arith.constant 0 : index
    %c0_6 = arith.constant 0 : index
    %5 = vector.load %arg4[%c0_5, %c0_6] : memref<8x8xf32, #tpu.memory_space<vmem>>, vector<8x8xf32>
    %cst = arith.constant dense<0.000000e+00> : vector<8x256xf32>
    %6 = tpu.matmul %5, %4, %cst {dimension_numbers = #tpu.dot_dimension_numbers<[1], [0], [0], [1], [0, 0, 1, 1], [], []>} : vector<8x8xf32>, vector<8x256xf32>, vector<8x256xf32> -> vector<8x256xf32>
    %c0_7 = arith.constant 0 : index
    %c0_8 = arith.constant 0 : index
    %7 = vector.load %arg5[%c0_7, %c0_8] : memref<8x1xf32, #tpu.memory_space<vmem>>, vector<8x1xf32>
    %8 = vector.broadcast %7 : vector<8x1xf32> to vector<8x256xf32>
    %9 = arith.addf %6, %8 : vector<8x256xf32>
    %c0_9 = arith.constant 0 : index
    %c0_10 = arith.constant 0 : index
    %c0_11 = arith.constant 0 : index
    %10 = vector.load %arg6[%c0_9, %c0_10, %c0_11] : memref<1x8x256xf32, #tpu.memory_space<vmem>>, vector<1x8x256xf32>
    %11 = vector.shape_cast %10 : vector<1x8x256xf32> to vector<8x256xf32>
    %12 = vector.shape_cast %9 : vector<8x256xf32> to vector<1x8x256xf32>
    tpu.vector_store %arg6[%c0_9, %c0_10, %c0_11], %12 {strides = array<i32>} : memref<1x8x256xf32, #tpu.memory_space<vmem>>, vector<1x8x256xf32>,
    return
  }
  func.func @transform_0(%arg0: i32, %arg1: i32) -> (i32, i32, i32) {
    %c0_i32 = arith.constant 0 : i32
    %c0_i32_0 = arith.constant 0 : i32
    return %arg0, %c0_i32, %arg1 : i32, i32, i32
  }
  func.func @transform_1(%arg0: i32, %arg1: i32) -> (i32, i32, i32) {
    %c0_i32 = arith.constant 0 : i32
    %c0_i32_0 = arith.constant 0 : i32
    return %arg0, %c0_i32, %arg1 : i32, i32, i32
  }
  func.func @transform_2(%arg0: i32, %arg1: i32) -> (i32, i32) {
    %c0_i32 = arith.constant 0 : i32
    %c0_i32_0 = arith.constant 0 : i32
    %c0_i32_1 = arith.constant 0 : i32
    return %c0_i32, %c0_i32_0 : i32, i32
  }
  func.func @transform_3(%arg0: i32, %arg1: i32) -> (i32, i32) {
    %c0_i32 = arith.constant 0 : i32
    %c0_i32_0 = arith.constant 0 : i32
    %c0_i32_1 = arith.constant 0 : i32
    return %c0_i32, %c0_i32_0 : i32, i32
  }
  func.func @transform_4(%arg0: i32, %arg1: i32) -> (i32, i32, i32) {
    %c0_i32 = arith.constant 0 : i32
    %c0_i32_0 = arith.constant 0 : i32
    return %arg0, %c0_i32, %arg1 : i32, i32, i32
  }
}

</mosaic_0001>

<llo_original>
// kernel: sa_base_4d_pallas.5
$region0: #{sa_base_4d_pallas.5}
  #allocation0 [shape = 'u32[]', space=smem, size = 0x4, offset = 0x4, fixed_abs, tag = 'smem constant byte address 0x4 - core index']
  #allocation1 [shape = 'u32[144,128]{1,0:T(1,128)}', space=vmem, size = 0x12000, scoped, tag = 'internal scratch']
  %s0 = inlined_call_operand.vmem [shape: f32[2,4,256], index: 0, kind: input, shape index: {}]
  %s1 = inlined_call_operand.vmem [shape: f32[2,4,256], index: 1, kind: input, shape index: {}]
  %s2 = inlined_call_operand.vmem [shape: f32[8,8], index: 2, kind: input, shape index: {}]
  %s3 = inlined_call_operand.vmem [shape: f32[8,1], index: 3, kind: input, shape index: {}]
  %s4 = inlined_call_operand.vmem [shape: f32[2,8,256], index: 4, kind: output, shape index: {}]
  %s5 = sld [smem:[#allocation0]]
  $region49: #{sa_base_4d_pallas.5} parent=0
    _
  %s7 = ssub.s32 1, %s5
  %s8 = scalar_select 0, %s7, %s5
  loop: start=0, step=1, limit=4
  $region2: #{sa_base_4d_pallas.5} parent=0 // loop_pre_header
    _
  $region3: #{sa_base_4d_pallas.5} parent=0 // loop_header
    %s10 = sphi 0, %s14
    %p11 = scmp.ge.s32.totalorder %s10, 4
    %s17 = sphi 0, %s29
    %s18 = sphi 0, %s25
    %s19 = sphi 0, %s17
    %s20 = sphi 0, %s18
    %s21 = sphi 0, %s19
    %s22 = sphi 0, %s20
    %s34 = sphi 0, %s36
    %s37 = sphi 0, %s34
    %s38 = sphi 0, %s37
    %s54 = sphi 0, %s38
    %s62 = sphi 0, %s64
    %s65 = sphi 0, %s62
    %s66 = sphi 0, %s65
    %s82 = sphi 0, %s66
    %s86 = sphi 0, %s86
    %s88 = sphi 0, %s86
    %s89 = sphi 0, %s88
    %s103 = sphi 0, %s89
    %s107 = sphi 0, %s107
    %s109 = sphi 0, %s107
    %s110 = sphi 0, %s109
    %s124 = sphi 0, %s110
    %s132 = sphi 0, %s134
    %s135 = sphi 0, %s132
    %s136 = sphi 0, %s135
    %s152 = sphi 0, %s136
  $region4: #{sa_base_4d_pallas.5} parent=0 // loop_header_branch
    %13 = sbr.rel (%p11) target = $region8
  $region5: #{sa_base_4d_pallas.5} parent=0 // loop_body
    %s15 = ssub.s32 %s10, 1
    %s16 = ssub.s32 %s10, 2
    %s23 = sadd.s32 1, %s18
    %p24 = scmp.ge.s32.totalorder %s23, 1
    %s25 = scalar_select %p24, 0, %s23
    %s26 = sadd.s32 1, %s17
    %s27 = scalar_select %p24, %s26, %s17
    %p28 = scmp.ge.s32.totalorder %s27, 2
    %s29 = scalar_select %p28, 0, %s27
    %s30 = ssub.s32 %s17, %s29
    %s31 = ssub.s32 %s18, %s25
    %s32 = sor.u32 %s30, %s31
    %p33 = scmp.eq.s32.totalorder %s32, 0
    %s35 = sadd.s32 %s34, 1
    %s36 = scalar_select %p33, %s34, %s35
    %p39 = pneg %p33
    %p40 = scmp.eq.s32.totalorder %s10, 1
    %p41 = por %p39, %p40
    %p42 = scmp.ne.s32.totalorder %s34, %s37
    %p43 = scmp.eq.s32.totalorder %s10, 0
    %p44 = por %p42, %p43
    %p45 = scmp.ne.s32.totalorder %s34, %s37
    %p46 = scmp.eq.s32.totalorder %s15, 1
    %p47 = por %p45, %p46
    %p48 = scmp.ne.s32.totalorder %s37, %s38
    %p49 = scmp.eq.s32.totalorder %s15, 0
    %p50 = por %p48, %p49
    %p51 = scmp.ne.s32.totalorder %s37, %s38
    %p52 = scmp.eq.s32.totalorder %s16, 1
    %p53 = por %p51, %p52
    %p55 = scmp.ne.s32.totalorder %s38, %s54
    %p56 = scmp.eq.s32.totalorder %s16, 0
    %p57 = por %p55, %p56
    %s58 = ssub.s32 %s17, %s29
    %s59 = ssub.s32 %s18, %s25
    %s60 = sor.u32 %s58, %s59
    %p61 = scmp.eq.s32.totalorder %s60, 0
    %s63 = sadd.s32 %s62, 1
    %s64 = scalar_select %p61, %s62, %s63
    %p67 = pneg %p61
    %p68 = scmp.eq.s32.totalorder %s10, 1
    %p69 = por %p67, %p68
    %p70 = scmp.ne.s32.totalorder %s62, %s65
    %p71 = scmp.eq.s32.totalorder %s10, 0
    %p72 = por %p70, %p71
    %p73 = scmp.ne.s32.totalorder %s62, %s65
    %p74 = scmp.eq.s32.totalorder %s15, 1
    %p75 = por %p73, %p74
    %p76 = scmp.ne.s32.totalorder %s65, %s66
    %p77 = scmp.eq.s32.totalorder %s15, 0
    %p78 = por %p76, %p77
    %p79 = scmp.ne.s32.totalorder %s65, %s66
    %p80 = scmp.eq.s32.totalorder %s16, 1
    %p81 = por %p79, %p80
    %p83 = scmp.ne.s32.totalorder %s66, %s82
    %p84 = scmp.eq.s32.totalorder %s16, 0
    %p85 = por %p83, %p84
    %s87 = sadd.s32 %s86, 1
    %p90 = scmp.eq.s32.totalorder %s10, 1
    %p91 = scmp.ne.s32.totalorder %s86, %s88
    %p92 = scmp.eq.s32.totalorder %s10, 0
    %p93 = por %p91, %p92
    %p94 = scmp.ne.s32.totalorder %s86, %s88
    %p95 = scmp.eq.s32.totalorder %s15, 1
    %p96 = por %p94, %p95
    %p97 = scmp.ne.s32.totalorder %s88, %s89
    %p98 = scmp.eq.s32.totalorder %s15, 0
    %p99 = por %p97, %p98
    %p100 = scmp.ne.s32.totalorder %s88, %s89
    %p101 = scmp.eq.s32.totalorder %s16, 1
    %p102 = por %p100, %p101
    %p104 = scmp.ne.s32.totalorder %s89, %s103
    %p105 = scmp.eq.s32.totalorder %s16, 0
    %p106 = por %p104, %p105
    %s108 = sadd.s32 %s107, 1
    %p111 = scmp.eq.s32.totalorder %s10, 1
    %p112 = scmp.ne.s32.totalorder %s107, %s109
    %p113 = scmp.eq.s32.totalorder %s10, 0
    %p114 = por %p112, %p113
    %p115 = scmp.ne.s32.totalorder %s107, %s109
    %p116 = scmp.eq.s32.totalorder %s15, 1
    %p117 = por %p115, %p116
    %p118 = scmp.ne.s32.totalorder %s109, %s110
    %p119 = scmp.eq.s32.totalorder %s15, 0
    %p120 = por %p118, %p119
    %p121 = scmp.ne.s32.totalorder %s109, %s110
    %p122 = scmp.eq.s32.totalorder %s16, 1
    %p123 = por %p121, %p122
    %p125 = scmp.ne.s32.totalorder %s110, %s124
    %p126 = scmp.eq.s32.totalorder %s16, 0
    %p127 = por %p125, %p126
    %s128 = ssub.s32 %s17, %s29
    %s129 = ssub.s32 %s18, %s25
    %s130 = sor.u32 %s128, %s129
    %p131 = scmp.eq.s32.totalorder %s130, 0
    %s133 = sadd.s32 %s132, 1
    %s134 = scalar_select %p131, %s132, %s133
    %p137 = pneg %p131
    %p138 = scmp.eq.s32.totalorder %s10, 1
    %p139 = por %p137, %p138
    %p140 = scmp.ne.s32.totalorder %s132, %s135
    %p141 = scmp.eq.s32.totalorder %s10, 0
    %p142 = por %p140, %p141
    %p143 = scmp.ne.s32.totalorder %s132, %s135
    %p144 = scmp.eq.s32.totalorder %s15, 1
    %p145 = por %p143, %p144
    %p146 = scmp.ne.s32.totalorder %s135, %s136
    %p147 = scmp.eq.s32.totalorder %s15, 0
    %p148 = por %p146, %p147
    %p149 = scmp.ne.s32.totalorder %s135, %s136
    %p150 = scmp.eq.s32.totalorder %s16, 1
    %p151 = por %p149, %p150
    %p153 = scmp.ne.s32.totalorder %s136, %s152
    %p154 = scmp.eq.s32.totalorder %s16, 0
    %p155 = por %p153, %p154
    %p156 = scmp.le.s32.totalorder 1, %s10
    %p157 = scmp.lt.s32.totalorder %s10, 3
    %p158 = pnand %p156, %p157
    %p159 = pneg %p158
    // Predicated region
    $region9: #{sa_base_4d_pallas.5} parent=5 // pred_check
      _
    $region10: #{sa_base_4d_pallas.5} parent=5 // pred_check_branch
      %161 = sbr.rel (%p158) target = $region12
    $region11: #{sa_base_4d_pallas.5} parent=5 // pred_region
      %s162 = ssub.s32 %s10, 1
      // Predicated region
      $region13: #{sa_base_4d_pallas.5} parent=11 // pred_check
        %p163 = pneg %p99
      $region14: #{sa_base_4d_pallas.5} parent=11 // pred_check_branch
        %165 = sbr.rel (%p163) target = $region16
      $region15: #{sa_base_4d_pallas.5} parent=11 // pred_region
        _
      $region16: #{sa_base_4d_pallas.5} parent=11 // pred_fallthru
        _
      // Predicated region
      $region17: #{sa_base_4d_pallas.5} parent=11 // pred_check
        %p166 = pneg %p120
      $region18: #{sa_base_4d_pallas.5} parent=11 // pred_check_branch
        %168 = sbr.rel (%p166) target = $region20
      $region19: #{sa_base_4d_pallas.5} parent=11 // pred_region
        _
      $region20: #{sa_base_4d_pallas.5} parent=11 // pred_fallthru
        _
    $region12: #{sa_base_4d_pallas.5} parent=5 // pred_fallthru
      _
    %p169 = scmp.lt.s32.totalorder %s10, 2
    // Predicated region
    $region21: #{sa_base_4d_pallas.5} parent=5 // pred_check
      %p170 = pneg %p169
    $region22: #{sa_base_4d_pallas.5} parent=5 // pred_check_branch
      %172 = sbr.rel (%p170) target = $region24
    $region23: #{sa_base_4d_pallas.5} parent=5 // pred_region
      // Predicated region
      $region25: #{sa_base_4d_pallas.5} parent=23 // pred_check
        %p173 = pneg %p44
      $region26: #{sa_base_4d_pallas.5} parent=23 // pred_check_branch
        %175 = sbr.rel (%p173) target = $region28
      $region27: #{sa_base_4d_pallas.5} parent=23 // pred_region
        %s176 = smul.u32 2, %s18
        %p177 = scmp.lt.s32.totalorder %s17, 1
        %s178 = scalar_select %p177, %s17, 1
        %p179 = scmp.lt.s32.totalorder %s176, 1
        %s180 = scalar_select %p179, %s176, 1
        %s181 = smul.addr %s178, 2
        %s182 = sadd.s32 %s180, %s181
        %s183 = smul.addr %s182, 4
        %s184 = scalar_lea.vmem %s0, %s183
        %s185 = smul.u32 2, %s18
      $region28: #{sa_base_4d_pallas.5} parent=23 // pred_fallthru
        _
      // Predicated region
      $region29: #{sa_base_4d_pallas.5} parent=23 // pred_check
        %p186 = pneg %p72
      $region30: #{sa_base_4d_pallas.5} parent=23 // pred_check_branch
        %188 = sbr.rel (%p186) target = $region32
      $region31: #{sa_base_4d_pallas.5} parent=23 // pred_region
        %s189 = smul.u32 2, %s18
        %p190 = scmp.lt.s32.totalorder %s17, 1
        %s191 = scalar_select %p190, %s17, 1
        %p192 = scmp.lt.s32.totalorder %s189, 1
        %s193 = scalar_select %p192, %s189, 1
        %s194 = smul.addr %s191, 2
        %s195 = sadd.s32 %s193, %s194
        %s196 = smul.addr %s195, 4
        %s197 = scalar_lea.vmem %s1, %s196
        %s198 = smul.u32 2, %s18
      $region32: #{sa_base_4d_pallas.5} parent=23 // pred_fallthru
        _
    $region24: #{sa_base_4d_pallas.5} parent=5 // pred_fallthru
      _
    %p199 = scmp.le.s32.totalorder 1, %s10
    %p200 = scmp.lt.s32.totalorder %s10, 3
    %p201 = pnand %p199, %p200
    %p202 = pneg %p201
    // Predicated region
    $region33: #{sa_base_4d_pallas.5} parent=5 // pred_check
      _
    $region34: #{sa_base_4d_pallas.5} parent=5 // pred_check_branch
      %204 = sbr.rel (%p201) target = $region36
    $region35: #{sa_base_4d_pallas.5} parent=5 // pred_region
      %s205 = ssub.s32 %s10, 1
      %s206 = smul.u32 2, %s20
      %p207 = scmp.lt.s32.totalorder %s19, 1
      %s208 = scalar_select %p207, %s19, 1
      %p209 = scmp.lt.s32.totalorder %s206, 1
      %s210 = scalar_select %p209, %s206, 1
      %s211 = smul.addr %s208, 2
      %s212 = sadd.s32 %s210, %s211
      %s213 = smul.addr %s212, 4
      %s214 = scalar_lea.vmem %s0, %s213
      %p215 = pneg %p50
      %p216 = pneg %p47
      %s217 = smul.u32 2, %s20
      %p218 = scmp.lt.s32.totalorder %s19, 1
      %s219 = scalar_select %p218, %s19, 1
      %p220 = scmp.lt.s32.totalorder %s217, 1
      %s221 = scalar_select %p220, %s217, 1
      %s222 = smul.addr %s219, 2
      %s223 = sadd.s32 %s221, %s222
      %s224 = smul.addr %s223, 4
      %s225 = scalar_lea.vmem %s1, %s224
      %p226 = pneg %p78
      %p227 = pneg %p75
      %p228 = pneg %p99
      %p229 = pneg %p96
      %p230 = pneg %p120
      %p231 = pneg %p117
      %p232 = pneg %p148
      %p233 = pneg %p145
      %s234 = smul.u32 2, %s20
      %p235 = scmp.lt.s32.totalorder %s19, 1
      %s236 = scalar_select %p235, %s19, 1
      %p237 = scmp.lt.s32.totalorder %s234, 1
      %s238 = scalar_select %p237, %s234, 1
      %s239 = smul.addr %s236, 2
      %s240 = sadd.s32 %s238, %s239
      %s241 = smul.addr %s240, 8
      %s242 = scalar_lea.vmem %s4, %s241
      %s243 = smul.u32 2, %s20
      %p244 = scmp.lt.s32.totalorder %s19, 1
      %s245 = scalar_select %p244, %s19, 1
      %p246 = scmp.lt.s32.totalorder %s243, 1
      %s247 = scalar_select %p246, %s243, 1
      %s248 = smul.addr %s245, 2
      %s249 = sadd.s32 %s247, %s248
      %s250 = smul.addr %s249, 4
      %s251 = scalar_lea.vmem %s0, %s250
      %s252 = smul.u32 2, %s20
      %s253 = smul.u32 2, %s20
      %p254 = scmp.lt.s32.totalorder %s19, 1
      %s255 = scalar_select %p254, %s19, 1
      %p256 = scmp.lt.s32.totalorder %s253, 1
      %s257 = scalar_select %p256, %s253, 1
      %s258 = smul.addr %s255, 2
      %s259 = sadd.s32 %s257, %s258
      %s260 = smul.addr %s259, 4
      %s261 = scalar_lea.vmem %s1, %s260
      %s262 = smul.u32 2, %s20
      %s263 = smul.u32 2, %s20
      %p264 = scmp.lt.s32.totalorder %s19, 1
      %s265 = scalar_select %p264, %s19, 1
      %p266 = scmp.lt.s32.totalorder %s263, 1
      %s267 = scalar_select %p266, %s263, 1
      %s268 = smul.addr %s265, 2
      %s269 = sadd.s32 %s267, %s268
      %s270 = smul.addr %s269, 8
      %s271 = scalar_lea.vmem %s4, %s270
      %s272 = smul.u32 2, %s20
      %v273 = vld [vmem:[%s251] sm:$0xff]
      %v274 = vld [vmem:[%s261] sm:$0xff]
      %v276 = vcombine.high %v273, %v273
      %v279 = vcombine.low %v274, %v274
      %vm281 = vcmask 1043456
      %v282 = vsel %vm281, %v273, %v279
      %v283 = vsel %vm281, %v276, %v274
      %v284 = vld [vmem:[%s2] sm:$0xff]
      %v285 = vld [vmem:[%s3] sm:$0xff]
      %287 = vset.pattern.permute.xlu0 0
      %288 = vperm.xlu0 %287, %v285
      %v289 = vpop.permute.xlu0 %288
      %vm291 = vcmask 64512
      %v293 = vsel %vm291, %v284, 0
      %295 = vmatprep.subr.mxu0 %v283
      %296 = vmatpush1.msra.mxu0 %v282
      %297 = vmatprep.subr.mxu0 0.0
      %298 = vmatpush1.msra.mxu0 0.0
      %299 = vmatprep.subr.mxu0 0.0
      %300 = vmatpush1.msra.mxu0 0.0
      %301 = vmatprep.subr.mxu0 0.0
      %302 = vmatpush1.msra.mxu0 0.0
      %303 = vmatprep.subr.mxu0 0.0
      %304 = vmatpush1.msra.mxu0 0.0
      %305 = vmatprep.subr.mxu0 0.0
      %306 = vmatpush1.msra.mxu0 0.0
      %307 = vmatprep.subr.mxu0 0.0
      %308 = vmatpush1.msra.mxu0 0.0
      %309 = vmatprep.subr.mxu0 0.0
      %310 = vmatpush1.msra.mxu0 0.0
      %311 = vmatprep.subr.mxu0 0.0
      %312 = vmatpush1.msra.mxu0 0.0
      %313 = vmatprep.subr.mxu0 0.0
      %314 = vmatpush1.msra.mxu0 0.0
      %315 = vmatprep.subr.mxu0 0.0
      %316 = vmatpush1.msra.mxu0 0.0
      %317 = vmatprep.subr.mxu0 0.0
      %318 = vmatpush1.msra.mxu0 0.0
      %319 = vmatprep.subr.mxu0 0.0
      %320 = vmatpush1.msra.mxu0 0.0
      %321 = vmatprep.subr.mxu0 0.0
      %322 = vmatpush1.msra.mxu0 0.0
      %323 = vmatprep.subr.mxu0 0.0
      %324 = vmatpush1.msra.mxu0 0.0
      %325 = vmatprep.subr.mxu0 0.0
      %326 = vmatpush1.msra.mxu0 0.0
      %327 = vmatprep.subr.mxu0 0.0
      %328 = vmatpush1.msra.mxu0 0.0
      %329 = vmatprep.subr.mxu0 0.0
      %330 = vmatpush1.msra.mxu0 0.0
      %331 = vmatprep.subr.mxu0 0.0
      %332 = vmatpush1.msra.mxu0 0.0
      %333 = vmatprep.subr.mxu0 0.0
      %334 = vmatpush1.msra.mxu0 0.0
      %335 = vmatprep.subr.mxu0 0.0
      %336 = vmatpush1.msra.mxu0 0.0
      %337 = vmatprep.subr.mxu0 0.0
      %338 = vmatpush1.msra.mxu0 0.0
      %339 = vmatprep.subr.mxu0 0.0
      %340 = vmatpush1.msra.mxu0 0.0
      %341 = vmatprep.subr.mxu0 0.0
      %342 = vmatpush1.msra.mxu0 0.0
      %343 = vmatprep.subr.mxu0 0.0
      %344 = vmatpush1.msra.mxu0 0.0
      %345 = vmatprep.subr.mxu0 0.0
      %346 = vmatpush1.msra.mxu0 0.0
      %347 = vmatprep.subr.mxu0 0.0
      %348 = vmatpush1.msra.mxu0 0.0
      %349 = vmatprep.subr.mxu0 0.0
      %350 = vmatpush1.msra.mxu0 0.0
      %351 = vmatprep.subr.mxu0 0.0
      %352 = vmatpush1.msra.mxu0 0.0
      %353 = vmatprep.subr.mxu0 0.0
      %354 = vmatpush1.msra.mxu0 0.0
      %355 = vmatprep.subr.mxu0 0.0
      %356 = vmatpush1.msra.mxu0 0.0
      %357 = vmatprep.subr.mxu0 0.0
      %358 = vmatpush1.msra.mxu0 0.0
      %359 = vmatprep.mubr.f32.mxu0 0.0
      %360 = vmatmul.mubr.f32.gmra.mrb[0].mxu0 %v293
      %v361 = vpop.f32.mrb[0].mxu0
      %v362 = vadd.f32 %v289, %v361
      %v363 = vpop.f32.mrb[0].mxu0
      %v364 = vadd.f32 %v289, %v363
      %365 = vdwg.mxu0
      %366 = vst [vmem:[%s271] sm:$0xff] %v362
      %367 = vst [vmem:[%s271 + $0x8] sm:$0xff] %v364
      %s368 = smul.u32 2, %s20
      %p369 = scmp.lt.s32.totalorder %s19, 1
      %s370 = scalar_select %p369, %s19, 1
      %p371 = scmp.lt.s32.totalorder %s368, 1
      %s372 = scalar_select %p371, %s368, 1
      %s373 = smul.addr %s370, 2
      %s374 = sadd.s32 %s372, %s373
      %s375 = smul.addr %s374, 8
      %s376 = scalar_lea.vmem %s4, %s375
      // Predicated region
      $region37: #{sa_base_4d_pallas.5} parent=35 // pred_check
        %p377 = pneg %p145
      $region38: #{sa_base_4d_pallas.5} parent=35 // pred_check_branch
        %379 = sbr.rel (%p377) target = $region40
      $region39: #{sa_base_4d_pallas.5} parent=35 // pred_region
        %s380 = smul.u32 2, %s20
      $region40: #{sa_base_4d_pallas.5} parent=35 // pred_fallthru
        _
    $region36: #{sa_base_4d_pallas.5} parent=5 // pred_fallthru
      _
    %p381 = scmp.le.s32.totalorder 2, %s10
    // Predicated region
    $region41: #{sa_base_4d_pallas.5} parent=5 // pred_check
      %p382 = pneg %p381
    $region42: #{sa_base_4d_pallas.5} parent=5 // pred_check_branch
      %384 = sbr.rel (%p382) target = $region44
    $region43: #{sa_base_4d_pallas.5} parent=5 // pred_region
      %s385 = ssub.s32 %s10, 2
      // Predicated region
      $region45: #{sa_base_4d_pallas.5} parent=43 // pred_check
        %p386 = pneg %p151
      $region46: #{sa_base_4d_pallas.5} parent=43 // pred_check_branch
        %388 = sbr.rel (%p386) target = $region48
      $region47: #{sa_base_4d_pallas.5} parent=43 // pred_region
        %s389 = smul.u32 2, %s22
        %p390 = scmp.lt.s32.totalorder %s21, 1
        %s391 = scalar_select %p390, %s21, 1
        %p392 = scmp.lt.s32.totalorder %s389, 1
        %s393 = scalar_select %p392, %s389, 1
        %s394 = smul.addr %s391, 2
        %s395 = sadd.s32 %s393, %s394
        %s396 = smul.addr %s395, 8
        %s397 = scalar_lea.vmem %s4, %s396
      $region48: #{sa_base_4d_pallas.5} parent=43 // pred_fallthru
        _
    $region44: #{sa_base_4d_pallas.5} parent=5 // pred_fallthru
      _
  $region6: #{sa_base_4d_pallas.5} parent=0 // loop_footer
    %s14 = sadd.s32 1, %s10
  $region7: #{sa_base_4d_pallas.5} parent=0 // loop_footer_branch
    %9 = sbr.rel target = $region3
  $region8: #{sa_base_4d_pallas.5} parent=0 // loop_exit
    _

// kernel: sa_base_4d_pallas.4
$region0: #{sa_base_4d_pallas.4}
  #allocation0 [shape = 'u32[]', space=smem, size = 0x4, offset = 0x4, fixed_abs, tag = 'smem constant byte address 0x4 - core index']
  #allocation1 [shape = 'u32[144,128]{1,0:T(1,128)}', space=vmem, size = 0x12000, scoped, tag = 'internal scratch']
  %s0 = inlined_call_operand.vmem [shape: f32[2,8,256], index: 0, kind: input, shape index: {}]
  %s1 = inlined_call_operand.vmem [shape: f32[8,4], index: 1, kind: input, shape index: {}]
  %s2 = inlined_call_operand.vmem [shape: f32[4,8], index: 2, kind: input, shape index: {}]
  %s3 = inlined_call_operand.vmem [shape: f32[1,4], index: 3, kind: input, shape index: {}]
  %s4 = inlined_call_operand.vmem [shape: f32[4,1], index: 4, kind: input, shape index: {}]
  %s5 = inlined_call_operand.vmem [shape: s32[256,1], index: 5, kind: input, shape index: {}]
  %s6 = inlined_call_operand.vmem [shape: s32[1,256], index: 6, kind: input, shape index: {}]
  %s7 = inlined_call_operand.vmem [shape: f32[2,4,256], index: 7, kind: output, shape index: {}]
  %s8 = sld [smem:[#allocation0]]
  $region61: #{sa_base_4d_pallas.4} parent=0
    _
  %s10 = ssub.s32 1, %s8
  %s11 = scalar_select 0, %s10, %s8
  loop: start=0, step=1, limit=6
  $region2: #{sa_base_4d_pallas.4} parent=0 // loop_pre_header
    _
  $region3: #{sa_base_4d_pallas.4} parent=0 // loop_header
    %s13 = sphi 0, %s17
    %p14 = scmp.ge.s32.totalorder %s13, 6
    %s20 = sphi 0, %s32
    %s21 = sphi 0, %s28
    %s22 = sphi 0, %s20
    %s23 = sphi 0, %s21
    %s24 = sphi 0, %s22
    %s25 = sphi 0, %s23
    %s37 = sphi 0, %s39
    %s40 = sphi 0, %s37
    %s41 = sphi 0, %s40
    %s57 = sphi 0, %s41
    %s61 = sphi 0, %s61
    %s63 = sphi 0, %s61
    %s64 = sphi 0, %s63
    %s78 = sphi 0, %s64
    %s82 = sphi 0, %s82
    %s84 = sphi 0, %s82
    %s85 = sphi 0, %s84
    %s99 = sphi 0, %s85
    %s103 = sphi 0, %s103
    %s105 = sphi 0, %s103
    %s106 = sphi 0, %s105
    %s120 = sphi 0, %s106
    %s124 = sphi 0, %s124
    %s126 = sphi 0, %s124
    %s127 = sphi 0, %s126
    %s141 = sphi 0, %s127
    %s147 = sphi 0, %s149
    %s150 = sphi 0, %s147
    %s151 = sphi 0, %s150
    %s167 = sphi 0, %s151
    %s173 = sphi 0, %s175
    %s176 = sphi 0, %s173
    %s177 = sphi 0, %s176
    %s193 = sphi 0, %s177
    %s201 = sphi 0, %s203
    %s204 = sphi 0, %s201
    %s205 = sphi 0, %s204
    %s221 = sphi 0, %s205
  $region4: #{sa_base_4d_pallas.4} parent=0 // loop_header_branch
    %16 = sbr.rel (%p14) target = $region8
  $region5: #{sa_base_4d_pallas.4} parent=0 // loop_body
    %s18 = ssub.s32 %s13, 1
    %s19 = ssub.s32 %s13, 2
    %s26 = sadd.s32 1, %s21
    %p27 = scmp.ge.s32.totalorder %s26, 2
    %s28 = scalar_select %p27, 0, %s26
    %s29 = sadd.s32 1, %s20
    %s30 = scalar_select %p27, %s29, %s20
    %p31 = scmp.ge.s32.totalorder %s30, 2
    %s32 = scalar_select %p31, 0, %s30
    %s33 = ssub.s32 %s20, %s32
    %s34 = ssub.s32 %s21, %s28
    %s35 = sor.u32 %s33, %s34
    %p36 = scmp.eq.s32.totalorder %s35, 0
    %s38 = sadd.s32 %s37, 1
    %s39 = scalar_select %p36, %s37, %s38
    %p42 = pneg %p36
    %p43 = scmp.eq.s32.totalorder %s13, 3
    %p44 = por %p42, %p43
    %p45 = scmp.ne.s32.totalorder %s37, %s40
    %p46 = scmp.eq.s32.totalorder %s13, 0
    %p47 = por %p45, %p46
    %p48 = scmp.ne.s32.totalorder %s37, %s40
    %p49 = scmp.eq.s32.totalorder %s18, 3
    %p50 = por %p48, %p49
    %p51 = scmp.ne.s32.totalorder %s40, %s41
    %p52 = scmp.eq.s32.totalorder %s18, 0
    %p53 = por %p51, %p52
    %p54 = scmp.ne.s32.totalorder %s40, %s41
    %p55 = scmp.eq.s32.totalorder %s19, 3
    %p56 = por %p54, %p55
    %p58 = scmp.ne.s32.totalorder %s41, %s57
    %p59 = scmp.eq.s32.totalorder %s19, 0
    %p60 = por %p58, %p59
    %s62 = sadd.s32 %s61, 1
    %p65 = scmp.eq.s32.totalorder %s13, 3
    %p66 = scmp.ne.s32.totalorder %s61, %s63
    %p67 = scmp.eq.s32.totalorder %s13, 0
    %p68 = por %p66, %p67
    %p69 = scmp.ne.s32.totalorder %s61, %s63
    %p70 = scmp.eq.s32.totalorder %s18, 3
    %p71 = por %p69, %p70
    %p72 = scmp.ne.s32.totalorder %s63, %s64
    %p73 = scmp.eq.s32.totalorder %s18, 0
    %p74 = por %p72, %p73
    %p75 = scmp.ne.s32.totalorder %s63, %s64
    %p76 = scmp.eq.s32.totalorder %s19, 3
    %p77 = por %p75, %p76
    %p79 = scmp.ne.s32.totalorder %s64, %s78
    %p80 = scmp.eq.s32.totalorder %s19, 0
    %p81 = por %p79, %p80
    %s83 = sadd.s32 %s82, 1
    %p86 = scmp.eq.s32.totalorder %s13, 3
    %p87 = scmp.ne.s32.totalorder %s82, %s84
    %p88 = scmp.eq.s32.totalorder %s13, 0
    %p89 = por %p87, %p88
    %p90 = scmp.ne.s32.totalorder %s82, %s84
    %p91 = scmp.eq.s32.totalorder %s18, 3
    %p92 = por %p90, %p91
    %p93 = scmp.ne.s32.totalorder %s84, %s85
    %p94 = scmp.eq.s32.totalorder %s18, 0
    %p95 = por %p93, %p94
    %p96 = scmp.ne.s32.totalorder %s84, %s85
    %p97 = scmp.eq.s32.totalorder %s19, 3
    %p98 = por %p96, %p97
    %p100 = scmp.ne.s32.totalorder %s85, %s99
    %p101 = scmp.eq.s32.totalorder %s19, 0
    %p102 = por %p100, %p101
    %s104 = sadd.s32 %s103, 1
    %p107 = scmp.eq.s32.totalorder %s13, 3
    %p108 = scmp.ne.s32.totalorder %s103, %s105
    %p109 = scmp.eq.s32.totalorder %s13, 0
    %p110 = por %p108, %p109
    %p111 = scmp.ne.s32.totalorder %s103, %s105
    %p112 = scmp.eq.s32.totalorder %s18, 3
    %p113 = por %p111, %p112
    %p114 = scmp.ne.s32.totalorder %s105, %s106
    %p115 = scmp.eq.s32.totalorder %s18, 0
    %p116 = por %p114, %p115
    %p117 = scmp.ne.s32.totalorder %s105, %s106
    %p118 = scmp.eq.s32.totalorder %s19, 3
    %p119 = por %p117, %p118
    %p121 = scmp.ne.s32.totalorder %s106, %s120
    %p122 = scmp.eq.s32.totalorder %s19, 0
    %p123 = por %p121, %p122
    %s125 = sadd.s32 %s124, 1
    %p128 = scmp.eq.s32.totalorder %s13, 3
    %p129 = scmp.ne.s32.totalorder %s124, %s126
    %p130 = scmp.eq.s32.totalorder %s13, 0
    %p131 = por %p129, %p130
    %p132 = scmp.ne.s32.totalorder %s124, %s126
    %p133 = scmp.eq.s32.totalorder %s18, 3
    %p134 = por %p132, %p133
    %p135 = scmp.ne.s32.totalorder %s126, %s127
    %p136 = scmp.eq.s32.totalorder %s18, 0
    %p137 = por %p135, %p136
    %p138 = scmp.ne.s32.totalorder %s126, %s127
    %p139 = scmp.eq.s32.totalorder %s19, 3
    %p140 = por %p138, %p139
    %p142 = scmp.ne.s32.totalorder %s127, %s141
    %p143 = scmp.eq.s32.totalorder %s19, 0
    %p144 = por %p142, %p143
    %s145 = ssub.s32 %s21, %s28
    %p146 = scmp.eq.s32.totalorder %s145, 0
    %s148 = sadd.s32 %s147, 1
    %s149 = scalar_select %p146, %s147, %s148
    %p152 = pneg %p146
    %p153 = scmp.eq.s32.totalorder %s13, 3
    %p154 = por %p152, %p153
    %p155 = scmp.ne.s32.totalorder %s147, %s150
    %p156 = scmp.eq.s32.totalorder %s13, 0
    %p157 = por %p155, %p156
    %p158 = scmp.ne.s32.totalorder %s147, %s150
    %p159 = scmp.eq.s32.totalorder %s18, 3
    %p160 = por %p158, %p159
    %p161 = scmp.ne.s32.totalorder %s150, %s151
    %p162 = scmp.eq.s32.totalorder %s18, 0
    %p163 = por %p161, %p162
    %p164 = scmp.ne.s32.totalorder %s150, %s151
    %p165 = scmp.eq.s32.totalorder %s19, 3
    %p166 = por %p164, %p165
    %p168 = scmp.ne.s32.totalorder %s151, %s167
    %p169 = scmp.eq.s32.totalorder %s19, 0
    %p170 = por %p168, %p169
    %s171 = ssub.s32 %s21, %s28
    %p172 = scmp.eq.s32.totalorder %s171, 0
    %s174 = sadd.s32 %s173, 1
    %s175 = scalar_select %p172, %s173, %s174
    %p178 = pneg %p172
    %p179 = scmp.eq.s32.totalorder %s13, 3
    %p180 = por %p178, %p179
    %p181 = scmp.ne.s32.totalorder %s173, %s176
    %p182 = scmp.eq.s32.totalorder %s13, 0
    %p183 = por %p181, %p182
    %p184 = scmp.ne.s32.totalorder %s173, %s176
    %p185 = scmp.eq.s32.totalorder %s18, 3
    %p186 = por %p184, %p185
    %p187 = scmp.ne.s32.totalorder %s176, %s177
    %p188 = scmp.eq.s32.totalorder %s18, 0
    %p189 = por %p187, %p188
    %p190 = scmp.ne.s32.totalorder %s176, %s177
    %p191 = scmp.eq.s32.totalorder %s19, 3
    %p192 = por %p190, %p191
    %p194 = scmp.ne.s32.totalorder %s177, %s193
    %p195 = scmp.eq.s32.totalorder %s19, 0
    %p196 = por %p194, %p195
    %s197 = ssub.s32 %s20, %s32
    %s198 = ssub.s32 %s21, %s28
    %s199 = sor.u32 %s197, %s198
    %p200 = scmp.eq.s32.totalorder %s199, 0
    %s202 = sadd.s32 %s201, 1
    %s203 = scalar_select %p200, %s201, %s202
    %p206 = pneg %p200
    %p207 = scmp.eq.s32.totalorder %s13, 3
    %p208 = por %p206, %p207
    %p209 = scmp.ne.s32.totalorder %s201, %s204
    %p210 = scmp.eq.s32.totalorder %s13, 0
    %p211 = por %p209, %p210
    %p212 = scmp.ne.s32.totalorder %s201, %s204
    %p213 = scmp.eq.s32.totalorder %s18, 3
    %p214 = por %p212, %p213
    %p215 = scmp.ne.s32.totalorder %s204, %s205
    %p216 = scmp.eq.s32.totalorder %s18, 0
    %p217 = por %p215, %p216
    %p218 = scmp.ne.s32.totalorder %s204, %s205
    %p219 = scmp.eq.s32.totalorder %s19, 3
    %p220 = por %p218, %p219
    %p222 = scmp.ne.s32.totalorder %s205, %s221
    %p223 = scmp.eq.s32.totalorder %s19, 0
    %p224 = por %p222, %p223
    %p225 = scmp.le.s32.totalorder 1, %s13
    %p226 = scmp.lt.s32.totalorder %s13, 5
    %p227 = pnand %p225, %p226
    %p228 = pneg %p227
    // Predicated region
    $region9: #{sa_base_4d_pallas.4} parent=5 // pred_check
      _
    $region10: #{sa_base_4d_pallas.4} parent=5 // pred_check_branch
      %230 = sbr.rel (%p227) target = $region12
    $region11: #{sa_base_4d_pallas.4} parent=5 // pred_region
      %s231 = ssub.s32 %s13, 1
      // Predicated region
      $region13: #{sa_base_4d_pallas.4} parent=11 // pred_check
        %p232 = pneg %p74
      $region14: #{sa_base_4d_pallas.4} parent=11 // pred_check_branch
        %234 = sbr.rel (%p232) target = $region16
      $region15: #{sa_base_4d_pallas.4} parent=11 // pred_region
        _
      $region16: #{sa_base_4d_pallas.4} parent=11 // pred_fallthru
        _
      // Predicated region
      $region17: #{sa_base_4d_pallas.4} parent=11 // pred_check
        %p235 = pneg %p95
      $region18: #{sa_base_4d_pallas.4} parent=11 // pred_check_branch
        %237 = sbr.rel (%p235) target = $region20
      $region19: #{sa_base_4d_pallas.4} parent=11 // pred_region
        _
      $region20: #{sa_base_4d_pallas.4} parent=11 // pred_fallthru
        _
      // Predicated region
      $region21: #{sa_base_4d_pallas.4} parent=11 // pred_check
        %p238 = pneg %p116
      $region22: #{sa_base_4d_pallas.4} parent=11 // pred_check_branch
        %240 = sbr.rel (%p238) target = $region24
      $region23: #{sa_base_4d_pallas.4} parent=11 // pred_region
        _
      $region24: #{sa_base_4d_pallas.4} parent=11 // pred_fallthru
        _
      // Predicated region
      $region25: #{sa_base_4d_pallas.4} parent=11 // pred_check
        %p241 = pneg %p137
      $region26: #{sa_base_4d_pallas.4} parent=11 // pred_check_branch
        %243 = sbr.rel (%p241) target = $region28
      $region27: #{sa_base_4d_pallas.4} parent=11 // pred_region
        _
      $region28: #{sa_base_4d_pallas.4} parent=11 // pred_fallthru
        _
    $region12: #{sa_base_4d_pallas.4} parent=5 // pred_fallthru
      _
    %p244 = scmp.lt.s32.totalorder %s13, 4
    // Predicated region
    $region29: #{sa_base_4d_pallas.4} parent=5 // pred_check
      %p245 = pneg %p244
    $region30: #{sa_base_4d_pallas.4} parent=5 // pred_check_branch
      %247 = sbr.rel (%p245) target = $region32
    $region31: #{sa_base_4d_pallas.4} parent=5 // pred_region
      // Predicated region
      $region33: #{sa_base_4d_pallas.4} parent=31 // pred_check
        %p248 = pneg %p47
      $region34: #{sa_base_4d_pallas.4} parent=31 // pred_check_branch
        %250 = sbr.rel (%p248) target = $region36
      $region35: #{sa_base_4d_pallas.4} parent=31 // pred_region
        %p251 = scmp.lt.s32.totalorder %s20, 1
        %s252 = scalar_select %p251, %s20, 1
        %p253 = scmp.lt.s32.totalorder %s21, 1
        %s254 = scalar_select %p253, %s21, 1
        %s255 = smul.addr %s252, 2
        %s256 = sadd.s32 %s254, %s255
        %s257 = smul.addr %s256, 8
        %s258 = scalar_lea.vmem %s0, %s257
      $region36: #{sa_base_4d_pallas.4} parent=31 // pred_fallthru
        _
      // Predicated region
      $region37: #{sa_base_4d_pallas.4} parent=31 // pred_check
        %p259 = pneg %p157
      $region38: #{sa_base_4d_pallas.4} parent=31 // pred_check_branch
        %261 = sbr.rel (%p259) target = $region40
      $region39: #{sa_base_4d_pallas.4} parent=31 // pred_region
        %s262 = smul.u32 16, %s21
        %p263 = scmp.lt.s32.totalorder %s262, 31
        %s264 = scalar_select %p263, %s262, 31
        %s265 = smul.addr %s264, 8
        %s266 = scalar_lea.vmem %s5, %s265
        %s267 = smul.u32 16, %s21
      $region40: #{sa_base_4d_pallas.4} parent=31 // pred_fallthru
        _
      // Predicated region
      $region41: #{sa_base_4d_pallas.4} parent=31 // pred_check
        %p268 = pneg %p183
      $region42: #{sa_base_4d_pallas.4} parent=31 // pred_check_branch
        %270 = sbr.rel (%p268) target = $region44
      $region43: #{sa_base_4d_pallas.4} parent=31 // pred_region
        %p271 = scmp.lt.s32.totalorder %s21, 1
        %s272 = scalar_select %p271, %s21, 1
        %s273 = scalar_lea.vmem %s6, %s272
      $region44: #{sa_base_4d_pallas.4} parent=31 // pred_fallthru
        _
    $region32: #{sa_base_4d_pallas.4} parent=5 // pred_fallthru
      _
    %p274 = scmp.le.s32.totalorder 1, %s13
    %p275 = scmp.lt.s32.totalorder %s13, 5
    %p276 = pnand %p274, %p275
    %p277 = pneg %p276
    // Predicated region
    $region45: #{sa_base_4d_pallas.4} parent=5 // pred_check
      _
    $region46: #{sa_base_4d_pallas.4} parent=5 // pred_check_branch
      %279 = sbr.rel (%p276) target = $region48
    $region47: #{sa_base_4d_pallas.4} parent=5 // pred_region
      %s280 = ssub.s32 %s13, 1
      %p281 = scmp.lt.s32.totalorder %s22, 1
      %s282 = scalar_select %p281, %s22, 1
      %p283 = scmp.lt.s32.totalorder %s23, 1
      %s284 = scalar_select %p283, %s23, 1
      %s285 = smul.addr %s282, 2
      %s286 = sadd.s32 %s284, %s285
      %s287 = smul.addr %s286, 8
      %s288 = scalar_lea.vmem %s0, %s287
      %p289 = pneg %p53
      %p290 = pneg %p50
      %p291 = pneg %p74
      %p292 = pneg %p71
      %p293 = pneg %p95
      %p294 = pneg %p92
      %p295 = pneg %p116
      %p296 = pneg %p113
      %p297 = pneg %p137
      %p298 = pneg %p134
      %s299 = smul.u32 16, %s23
      %p300 = scmp.lt.s32.totalorder %s299, 31
      %s301 = scalar_select %p300, %s299, 31
      %s302 = smul.addr %s301, 8
      %s303 = scalar_lea.vmem %s5, %s302
      %p304 = pneg %p163
      %p305 = pneg %p160
      %p306 = scmp.lt.s32.totalorder %s23, 1
      %s307 = scalar_select %p306, %s23, 1
      %s308 = scalar_lea.vmem %s6, %s307
      %p309 = pneg %p189
      %p310 = pneg %p186
      %p311 = pneg %p217
      %p312 = pneg %p214
      %p313 = scmp.lt.s32.totalorder %s22, 1
      %s314 = scalar_select %p313, %s22, 1
      %p315 = scmp.lt.s32.totalorder %s23, 1
      %s316 = scalar_select %p315, %s23, 1
      %s317 = smul.addr %s314, 2
      %s318 = sadd.s32 %s316, %s317
      %s319 = smul.addr %s318, 4
      %s320 = scalar_lea.vmem %s7, %s319
      %p321 = scmp.lt.s32.totalorder %s22, 1
      %s322 = scalar_select %p321, %s22, 1
      %p323 = scmp.lt.s32.totalorder %s23, 1
      %s324 = scalar_select %p323, %s23, 1
      %s325 = smul.addr %s322, 2
      %s326 = sadd.s32 %s324, %s325
      %s327 = smul.addr %s326, 8
      %s328 = scalar_lea.vmem %s0, %s327
      %s329 = smul.u32 16, %s23
      %p330 = scmp.lt.s32.totalorder %s329, 31
      %s331 = scalar_select %p330, %s329, 31
      %s332 = smul.addr %s331, 8
      %s333 = scalar_lea.vmem %s5, %s332
      %s334 = smul.u32 16, %s23
      %p335 = scmp.lt.s32.totalorder %s23, 1
      %s336 = scalar_select %p335, %s23, 1
      %s337 = scalar_lea.vmem %s6, %s336
      %p338 = scmp.lt.s32.totalorder %s22, 1
      %s339 = scalar_select %p338, %s22, 1
      %p340 = scmp.lt.s32.totalorder %s23, 1
      %s341 = scalar_select %p340, %s23, 1
      %s342 = smul.addr %s339, 2
      %s343 = sadd.s32 %s341, %s342
      %s344 = smul.addr %s343, 4
      %s345 = scalar_lea.vmem %s7, %s344
      %v346 = vld [vmem:[%s328] sm:$0xff]
      %347 = vxpose.xlu0.b32.start [1/16] %v346, 128
      %348 = vxpose.xlu0.b32.cont [2/16] 0.0, 128
      %349 = vxpose.xlu0.b32.cont [3/16] 0.0, 128
      %350 = vxpose.xlu0.b32.cont [4/16] 0.0, 128
      %351 = vxpose.xlu0.b32.cont [5/16] 0.0, 128
      %352 = vxpose.xlu0.b32.cont [6/16] 0.0, 128
      %353 = vxpose.xlu0.b32.cont [7/16] 0.0, 128
      %354 = vxpose.xlu0.b32.cont [8/16] 0.0, 128
      %355 = vxpose.xlu0.b32.cont [9/16] 0.0, 128
      %356 = vxpose.xlu0.b32.cont [10/16] 0.0, 128
      %357 = vxpose.xlu0.b32.cont [11/16] 0.0, 128
      %358 = vxpose.xlu0.b32.cont [12/16] 0.0, 128
      %359 = vxpose.xlu0.b32.cont [13/16] 0.0, 128
      %360 = vxpose.xlu0.b32.cont [14/16] 0.0, 128
      %361 = vxpose.xlu0.b32.cont [15/16] 0.0, 128
      %362 = vxpose.xlu0.b32.end [16/16] 0.0, 128
      %v363 = vpop.trf.xlu0
      %v364 = vpop.trf.xlu0
      %v365 = vpop.trf.xlu0
      %v366 = vpop.trf.xlu0
      %v367 = vpop.trf.xlu0
      %v368 = vpop.trf.xlu0
      %v369 = vpop.trf.xlu0
      %v370 = vpop.trf.xlu0
      %v371 = vpop.trf.xlu0
      %v372 = vpop.trf.xlu0
      %v373 = vpop.trf.xlu0
      %v374 = vpop.trf.xlu0
      %v375 = vpop.trf.xlu0
      %v376 = vpop.trf.xlu0
      %v377 = vpop.trf.xlu0
      %v378 = vpop.trf.xlu0
      %v379 = vld [vmem:[%s1] sm:$0xff]
      %v380 = vld [vmem:[%s3] sm:$0x1]
      %v382 = vlaneseq
      %v383 = vshrl.u32 %v382, 7
      %v384 = vsub.s32 0, %v383
      %v385 = vrot.slane %v380, %v384
      %vm387 = vcmask 64512
      %v389 = vsel %vm387, %v363, 0
      %v392 = vsel %vm387, %v364, 0
      %v395 = vsel %vm387, %v365, 0
      %v398 = vsel %vm387, %v366, 0
      %v401 = vsel %vm387, %v367, 0
      %v404 = vsel %vm387, %v368, 0
      %v407 = vsel %vm387, %v369, 0
      %v410 = vsel %vm387, %v370, 0
      %v413 = vsel %vm387, %v371, 0
      %v416 = vsel %vm387, %v372, 0
      %v419 = vsel %vm387, %v373, 0
      %v422 = vsel %vm387, %v374, 0
      %v425 = vsel %vm387, %v375, 0
      %v428 = vsel %vm387, %v376, 0
      %v431 = vsel %vm387, %v377, 0
      %v434 = vsel %vm387, %v378, 0
      %436 = vmatprep.subr.mxu0 0.0
      %437 = vmatpush1.msra.mxu0 %v379
      %438 = vmatprep.subr.mxu0 0.0
      %439 = vmatpush1.msra.mxu0 0.0
      %440 = vmatprep.subr.mxu0 0.0
      %441 = vmatpush1.msra.mxu0 0.0
      %442 = vmatprep.subr.mxu0 0.0
      %443 = vmatpush1.msra.mxu0 0.0
      %444 = vmatprep.subr.mxu0 0.0
      %445 = vmatpush1.msra.mxu0 0.0
      %446 = vmatprep.subr.mxu0 0.0
      %447 = vmatpush1.msra.mxu0 0.0
      %448 = vmatprep.subr.mxu0 0.0
      %449 = vmatpush1.msra.mxu0 0.0
      %450 = vmatprep.subr.mxu0 0.0
      %451 = vmatpush1.msra.mxu0 0.0
      %452 = vmatprep.subr.mxu0 0.0
      %453 = vmatpush1.msra.mxu0 0.0
      %454 = vmatprep.subr.mxu0 0.0
      %455 = vmatpush1.msra.mxu0 0.0
      %456 = vmatprep.subr.mxu0 0.0
      %457 = vmatpush1.msra.mxu0 0.0
      %458 = vmatprep.subr.mxu0 0.0
      %459 = vmatpush1.msra.mxu0 0.0
      %460 = vmatprep.subr.mxu0 0.0
      %461 = vmatpush1.msra.mxu0 0.0
      %462 = vmatprep.subr.mxu0 0.0
      %463 = vmatpush1.msra.mxu0 0.0
      %464 = vmatprep.subr.mxu0 0.0
      %465 = vmatpush1.msra.mxu0 0.0
      %466 = vmatprep.subr.mxu0 0.0
      %467 = vmatpush1.msra.mxu0 0.0
      %468 = vmatprep.subr.mxu0 0.0
      %469 = vmatpush1.msra.mxu0 0.0
      %470 = vmatprep.subr.mxu0 0.0
      %471 = vmatpush1.msra.mxu0 0.0
      %472 = vmatprep.subr.mxu0 0.0
      %473 = vmatpush1.msra.mxu0 0.0
      %474 = vmatprep.subr.mxu0 0.0
      %475 = vmatpush1.msra.mxu0 0.0
      %476 = vmatprep.subr.mxu0 0.0
      %477 = vmatpush1.msra.mxu0 0.0
      %478 = vmatprep.subr.mxu0 0.0
      %479 = vmatpush1.msra.mxu0 0.0
      %480 = vmatprep.subr.mxu0 0.0
      %481 = vmatpush1.msra.mxu0 0.0
      %482 = vmatprep.subr.mxu0 0.0
      %483 = vmatpush1.msra.mxu0 0.0
      %484 = vmatprep.subr.mxu0 0.0
      %485 = vmatpush1.msra.mxu0 0.0
      %486 = vmatprep.subr.mxu0 0.0
      %487 = vmatpush1.msra.mxu0 0.0
      %488 = vmatprep.subr.mxu0 0.0
      %489 = vmatpush1.msra.mxu0 0.0
      %490 = vmatprep.subr.mxu0 0.0
      %491 = vmatpush1.msra.mxu0 0.0
      %492 = vmatprep.subr.mxu0 0.0
      %493 = vmatpush1.msra.mxu0 0.0
      %494 = vmatprep.subr.mxu0 0.0
      %495 = vmatpush1.msra.mxu0 0.0
      %496 = vmatprep.subr.mxu0 0.0
      %497 = vmatpush1.msra.mxu0 0.0
      %498 = vmatprep.subr.mxu0 0.0
      %499 = vmatpush1.msra.mxu0 0.0
      %500 = vmatprep.mubr.f32.mxu0 0.0
      %501 = vmatmul.mubr.f32.gmra.mrb[0].mxu0 %v389
      %v502 = vpop.f32.mrb[0].mxu0
      %v503 = vadd.f32 %v385, %v502
      %v504 = vpop.f32.mrb[0].mxu0
      %505 = vmatprep.mubr.f32.mxu0 0.0
      %506 = vmatmul.mubr.f32.gmra.mrb[0].mxu0 %v392
      %v507 = vpop.f32.mrb[0].mxu0
      %v508 = vadd.f32 %v385, %v507
      %v509 = vpop.f32.mrb[0].mxu0
      %510 = vmatprep.mubr.f32.mxu0 0.0
      %511 = vmatmul.mubr.f32.gmra.mrb[0].mxu0 %v395
      %v512 = vpop.f32.mrb[0].mxu0
      %v513 = vadd.f32 %v385, %v512
      %v514 = vpop.f32.mrb[0].mxu0
      %515 = vmatprep.mubr.f32.mxu0 0.0
      %516 = vmatmul.mubr.f32.gmra.mrb[0].mxu0 %v398
      %v517 = vpop.f32.mrb[0].mxu0
      %v518 = vadd.f32 %v385, %v517
      %v519 = vpop.f32.mrb[0].mxu0
      %520 = vmatprep.mubr.f32.mxu0 0.0
      %521 = vmatmul.mubr.f32.gmra.mrb[0].mxu0 %v401
      %v522 = vpop.f32.mrb[0].mxu0
      %v523 = vadd.f32 %v385, %v522
      %v524 = vpop.f32.mrb[0].mxu0
      %525 = vmatprep.mubr.f32.mxu0 0.0
      %526 = vmatmul.mubr.f32.gmra.mrb[0].mxu0 %v404
      %v527 = vpop.f32.mrb[0].mxu0
      %v528 = vadd.f32 %v385, %v527
      %v529 = vpop.f32.mrb[0].mxu0
      %530 = vmatprep.mubr.f32.mxu0 0.0
      %531 = vmatmul.mubr.f32.gmra.mrb[0].mxu0 %v407
      %v532 = vpop.f32.mrb[0].mxu0
      %v533 = vadd.f32 %v385, %v532
      %v534 = vpop.f32.mrb[0].mxu0
      %535 = vmatprep.mubr.f32.mxu0 0.0
      %536 = vmatmul.mubr.f32.gmra.mrb[0].mxu0 %v410
      %v537 = vpop.f32.mrb[0].mxu0
      %v538 = vadd.f32 %v385, %v537
      %v539 = vpop.f32.mrb[0].mxu0
      %540 = vmatprep.mubr.f32.mxu0 0.0
      %541 = vmatmul.mubr.f32.gmra.mrb[0].mxu0 %v413
      %v542 = vpop.f32.mrb[0].mxu0
      %v543 = vadd.f32 %v385, %v542
      %v544 = vpop.f32.mrb[0].mxu0
      %545 = vmatprep.mubr.f32.mxu0 0.0
      %546 = vmatmul.mubr.f32.gmra.mrb[0].mxu0 %v416
      %v547 = vpop.f32.mrb[0].mxu0
      %v548 = vadd.f32 %v385, %v547
      %v549 = vpop.f32.mrb[0].mxu0
      %550 = vmatprep.mubr.f32.mxu0 0.0
      %551 = vmatmul.mubr.f32.gmra.mrb[0].mxu0 %v419
      %v552 = vpop.f32.mrb[0].mxu0
      %v553 = vadd.f32 %v385, %v552
      %v554 = vpop.f32.mrb[0].mxu0
      %555 = vmatprep.mubr.f32.mxu0 0.0
      %556 = vmatmul.mubr.f32.gmra.mrb[0].mxu0 %v422
      %v557 = vpop.f32.mrb[0].mxu0
      %v558 = vadd.f32 %v385, %v557
      %v559 = vpop.f32.mrb[0].mxu0
      %560 = vmatprep.mubr.f32.mxu0 0.0
      %561 = vmatmul.mubr.f32.gmra.mrb[0].mxu0 %v425
      %v562 = vpop.f32.mrb[0].mxu0
      %v563 = vadd.f32 %v385, %v562
      %v564 = vpop.f32.mrb[0].mxu0
      %565 = vmatprep.mubr.f32.mxu0 0.0
      %566 = vmatmul.mubr.f32.gmra.mrb[0].mxu0 %v428
      %v567 = vpop.f32.mrb[0].mxu0
      %v568 = vadd.f32 %v385, %v567
      %v569 = vpop.f32.mrb[0].mxu0
      %570 = vmatprep.mubr.f32.mxu0 0.0
      %571 = vmatmul.mubr.f32.gmra.mrb[0].mxu0 %v431
      %v572 = vpop.f32.mrb[0].mxu0
      %v573 = vadd.f32 %v385, %v572
      %v574 = vpop.f32.mrb[0].mxu0
      %575 = vmatprep.mubr.f32.mxu0 0.0
      %576 = vmatmul.mubr.f32.gmra.mrb[0].mxu0 %v434
      %v577 = vpop.f32.mrb[0].mxu0
      %v578 = vadd.f32 %v385, %v577
      %v579 = vpop.f32.mrb[0].mxu0
      %580 = vdwg.mxu0
      %v581 = vld [vmem:[%s2] sm:$0xf]
      %v582 = vld [vmem:[%s4] sm:$0xf]
      %584 = vset.pattern.permute.xlu0 0
      %585 = vperm.xlu0 %584, %v582
      %v586 = vpop.permute.xlu0 %585
      %v589 = vsel %vm387, %v581, 0
      %591 = vmatprep.subr.mxu0 0.0
      %592 = vmatpush1.msra.mxu0 %v346
      %593 = vmatprep.subr.mxu0 0.0
      %594 = vmatpush1.msra.mxu0 0.0
      %595 = vmatprep.subr.mxu0 0.0
      %596 = vmatpush1.msra.mxu0 0.0
      %597 = vmatprep.subr.mxu0 0.0
      %598 = vmatpush1.msra.mxu0 0.0
      %599 = vmatprep.subr.mxu0 0.0
      %600 = vmatpush1.msra.mxu0 0.0
      %601 = vmatprep.subr.mxu0 0.0
      %602 = vmatpush1.msra.mxu0 0.0
      %603 = vmatprep.subr.mxu0 0.0
      %604 = vmatpush1.msra.mxu0 0.0
      %605 = vmatprep.subr.mxu0 0.0
      %606 = vmatpush1.msra.mxu0 0.0
      %607 = vmatprep.subr.mxu0 0.0
      %608 = vmatpush1.msra.mxu0 0.0
      %609 = vmatprep.subr.mxu0 0.0
      %610 = vmatpush1.msra.mxu0 0.0
      %611 = vmatprep.subr.mxu0 0.0
      %612 = vmatpush1.msra.mxu0 0.0
      %613 = vmatprep.subr.mxu0 0.0
      %614 = vmatpush1.msra.mxu0 0.0
      %615 = vmatprep.subr.mxu0 0.0
      %616 = vmatpush1.msra.mxu0 0.0
      %617 = vmatprep.subr.mxu0 0.0
      %618 = vmatpush1.msra.mxu0 0.0
      %619 = vmatprep.subr.mxu0 0.0
      %620 = vmatpush1.msra.mxu0 0.0
      %621 = vmatprep.subr.mxu0 0.0
      %622 = vmatpush1.msra.mxu0 0.0
      %623 = vmatprep.subr.mxu0 0.0
      %624 = vmatpush1.msra.mxu0 0.0
      %625 = vmatprep.subr.mxu0 0.0
      %626 = vmatpush1.msra.mxu0 0.0
      %627 = vmatprep.subr.mxu0 0.0
      %628 = vmatpush1.msra.mxu0 0.0
      %629 = vmatprep.subr.mxu0 0.0
      %630 = vmatpush1.msra.mxu0 0.0
      %631 = vmatprep.subr.mxu0 0.0
      %632 = vmatpush1.msra.mxu0 0.0
      %633 = vmatprep.subr.mxu0 0.0
      %634 = vmatpush1.msra.mxu0 0.0
      %635 = vmatprep.subr.mxu0 0.0
      %636 = vmatpush1.msra.mxu0 0.0
      %637 = vmatprep.subr.mxu0 0.0
      %638 = vmatpush1.msra.mxu0 0.0
      %639 = vmatprep.subr.mxu0 0.0
      %640 = vmatpush1.msra.mxu0 0.0
      %641 = vmatprep.subr.mxu0 0.0
      %642 = vmatpush1.msra.mxu0 0.0
      %643 = vmatprep.subr.mxu0 0.0
      %644 = vmatpush1.msra.mxu0 0.0
      %645 = vmatprep.subr.mxu0 0.0
      %646 = vmatpush1.msra.mxu0 0.0
      %647 = vmatprep.subr.mxu0 0.0
      %648 = vmatpush1.msra.mxu0 0.0
      %649 = vmatprep.subr.mxu0 0.0
      %650 = vmatpush1.msra.mxu0 0.0
      %651 = vmatprep.subr.mxu0 0.0
      %652 = vmatpush1.msra.mxu0 0.0
      %653 = vmatprep.subr.mxu0 0.0
      %654 = vmatpush1.msra.mxu0 0.0
      %655 = vmatprep.mubr.f32.mxu0 0.0
      %656 = vmatmul.mubr.f32.gmra.mrb[0].mxu0 %v589
      %v657 = vpop.f32.mrb[0].mxu0
      %v658 = vadd.f32 %v586, %v657
      %v659 = vpop.f32.mrb[0].mxu0
      %660 = vdwg.mxu0
      %v661 = vld [vmem:[%s333] sm:$0xff]
      %v662 = vld [vmem:[%s333 + $0x8] sm:$0xff]
      %v663 = vld [vmem:[%s333 + $0x10] sm:$0xff]
      %v664 = vld [vmem:[%s333 + $0x18] sm:$0xff]
      %v665 = vld [vmem:[%s333 + $0x20] sm:$0xff]
      %v666 = vld [vmem:[%s333 + $0x28] sm:$0xff]
      %v667 = vld [vmem:[%s333 + $0x30] sm:$0xff]
      %v668 = vld [vmem:[%s333 + $0x38] sm:$0xff]
      %v669 = vld [vmem:[%s333 + $0x40] sm:$0xff]
      %v670 = vld [vmem:[%s333 + $0x48] sm:$0xff]
      %v671 = vld [vmem:[%s333 + $0x50] sm:$0xff]
      %v672 = vld [vmem:[%s333 + $0x58] sm:$0xff]
      %v673 = vld [vmem:[%s333 + $0x60] sm:$0xff]
      %v674 = vld [vmem:[%s333 + $0x68] sm:$0xff]
      %v675 = vld [vmem:[%s333 + $0x70] sm:$0xff]
      %v676 = vld [vmem:[%s333 + $0x78] sm:$0xff]
      %v677 = vld [vmem:[%s337] sm:$0x1]
      %678 = vset.pattern.permute.xlu0 0
      %679 = vperm.xlu0 %678, %v661
      %v680 = vpop.permute.xlu0 %679
      %681 = vset.pattern.permute.xlu0 0
      %682 = vperm.xlu0 %681, %v662
      %v683 = vpop.permute.xlu0 %682
      %684 = vset.pattern.permute.xlu0 0
      %685 = vperm.xlu0 %684, %v663
      %v686 = vpop.permute.xlu0 %685
      %687 = vset.pattern.permute.xlu0 0
      %688 = vperm.xlu0 %687, %v664
      %v689 = vpop.permute.xlu0 %688
      %690 = vset.pattern.permute.xlu0 0
      %691 = vperm.xlu0 %690, %v665
      %v692 = vpop.permute.xlu0 %691
      %693 = vset.pattern.permute.xlu0 0
      %694 = vperm.xlu0 %693, %v666
      %v695 = vpop.permute.xlu0 %694
      %696 = vset.pattern.permute.xlu0 0
      %697 = vperm.xlu0 %696, %v667
      %v698 = vpop.permute.xlu0 %697
      %699 = vset.pattern.permute.xlu0 0
      %700 = vperm.xlu0 %699, %v668
      %v701 = vpop.permute.xlu0 %700
      %702 = vset.pattern.permute.xlu0 0
      %703 = vperm.xlu0 %702, %v669
      %v704 = vpop.permute.xlu0 %703
      %705 = vset.pattern.permute.xlu0 0
      %706 = vperm.xlu0 %705, %v670
      %v707 = vpop.permute.xlu0 %706
      %708 = vset.pattern.permute.xlu0 0
      %709 = vperm.xlu0 %708, %v671
      %v710 = vpop.permute.xlu0 %709
      %711 = vset.pattern.permute.xlu0 0
      %712 = vperm.xlu0 %711, %v672
      %v713 = vpop.permute.xlu0 %712
      %714 = vset.pattern.permute.xlu0 0
      %715 = vperm.xlu0 %714, %v673
      %v716 = vpop.permute.xlu0 %715
      %717 = vset.pattern.permute.xlu0 0
      %718 = vperm.xlu0 %717, %v674
      %v719 = vpop.permute.xlu0 %718
      %720 = vset.pattern.permute.xlu0 0
      %721 = vperm.xlu0 %720, %v675
      %v722 = vpop.permute.xlu0 %721
      %723 = vset.pattern.permute.xlu0 0
      %724 = vperm.xlu0 %723, %v676
      %v725 = vpop.permute.xlu0 %724
      %v726 = vlaneseq
      %v727 = vshrl.u32 %v726, 7
      %v728 = vsub.s32 0, %v727
      %v729 = vrot.slane %v677, %v728
      %vm730 = vcmp.eq.s32.totalorder %v680, %v729
      %vm731 = vcmp.eq.s32.totalorder %v683, %v729
      %vm732 = vcmp.eq.s32.totalorder %v686, %v729
      %vm733 = vcmp.eq.s32.totalorder %v689, %v729
      %vm734 = vcmp.eq.s32.totalorder %v692, %v729
      %vm735 = vcmp.eq.s32.totalorder %v695, %v729
      %vm736 = vcmp.eq.s32.totalorder %v698, %v729
      %vm737 = vcmp.eq.s32.totalorder %v701, %v729
      %vm738 = vcmp.eq.s32.totalorder %v704, %v729
      %vm739 = vcmp.eq.s32.totalorder %v707, %v729
      %vm740 = vcmp.eq.s32.totalorder %v710, %v729
      %vm741 = vcmp.eq.s32.totalorder %v713, %v729
      %vm742 = vcmp.eq.s32.totalorder %v716, %v729
      %vm743 = vcmp.eq.s32.totalorder %v719, %v729
      %vm744 = vcmp.eq.s32.totalorder %v722, %v729
      %vm745 = vcmp.eq.s32.totalorder %v725, %v729
      %vm746 = vcmask 15360
      %v748 = vsel %vm746, %v503, 0
      %v751 = vsel %vm746, %v508, 0
      %v754 = vsel %vm746, %v513, 0
      %v757 = vsel %vm746, %v518, 0
      %v760 = vsel %vm746, %v523, 0
      %v763 = vsel %vm746, %v528, 0
      %v766 = vsel %vm746, %v533, 0
      %v769 = vsel %vm746, %v538, 0
      %v772 = vsel %vm746, %v543, 0
      %v775 = vsel %vm746, %v548, 0
      %v778 = vsel %vm746, %v553, 0
      %v781 = vsel %vm746, %v558, 0
      %v784 = vsel %vm746, %v563, 0
      %v787 = vsel %vm746, %v568, 0
      %v790 = vsel %vm746, %v573, 0
      %v793 = vsel %vm746, %v578, 0
      %795 = vmatprep.subr.mxu0 0.0
      %796 = vmatpush1.xpose.msra.mxu0 %v748
      %797 = vmatprep.subr.mxu0 0.0
      %798 = vmatpush1.xpose.msra.mxu0 %v751
      %799 = vmatprep.subr.mxu0 0.0
      %800 = vmatpush1.xpose.msra.mxu0 %v754
      %801 = vmatprep.subr.mxu0 0.0
      %802 = vmatpush1.xpose.msra.mxu0 %v757
      %803 = vmatprep.subr.mxu0 0.0
      %804 = vmatpush1.xpose.msra.mxu0 %v760
      %805 = vmatprep.subr.mxu0 0.0
      %806 = vmatpush1.xpose.msra.mxu0 %v763
      %807 = vmatprep.subr.mxu0 0.0
      %808 = vmatpush1.xpose.msra.mxu0 %v766
      %809 = vmatprep.subr.mxu0 0.0
      %810 = vmatpush1.xpose.msra.mxu0 %v769
      %811 = vmatprep.subr.mxu0 0.0
      %812 = vmatpush1.xpose.msra.mxu0 %v772
      %813 = vmatprep.subr.mxu0 0.0
      %814 = vmatpush1.xpose.msra.mxu0 %v775
      %815 = vmatprep.subr.mxu0 0.0
      %816 = vmatpush1.xpose.msra.mxu0 %v778
      %817 = vmatprep.subr.mxu0 0.0
      %818 = vmatpush1.xpose.msra.mxu0 %v781
      %819 = vmatprep.subr.mxu0 0.0
      %820 = vmatpush1.xpose.msra.mxu0 %v784
      %821 = vmatprep.subr.mxu0 0.0
      %822 = vmatpush1.xpose.msra.mxu0 %v787
      %823 = vmatprep.subr.mxu0 0.0
      %824 = vmatpush1.xpose.msra.mxu0 %v790
      %825 = vmatprep.subr.mxu0 0.0
      %826 = vmatpush1.xpose.msra.mxu0 %v793
      %827 = vmatprep.subr.mxu0 0.0
      %828 = vmatpush1.xpose.msra.mxu0 0.0
      %829 = vmatprep.subr.mxu0 0.0
      %830 = vmatpush1.xpose.msra.mxu0 0.0
      %831 = vmatprep.subr.mxu0 0.0
      %832 = vmatpush1.xpose.msra.mxu0 0.0
      %833 = vmatprep.subr.mxu0 0.0
      %834 = vmatpush1.xpose.msra.mxu0 0.0
      %835 = vmatprep.subr.mxu0 0.0
      %836 = vmatpush1.xpose.msra.mxu0 0.0
      %837 = vmatprep.subr.mxu0 0.0
      %838 = vmatpush1.xpose.msra.mxu0 0.0
      %839 = vmatprep.subr.mxu0 0.0
      %840 = vmatpush1.xpose.msra.mxu0 0.0
      %841 = vmatprep.subr.mxu0 0.0
      %842 = vmatpush1.xpose.msra.mxu0 0.0
      %843 = vmatprep.subr.mxu0 0.0
      %844 = vmatpush1.xpose.msra.mxu0 0.0
      %845 = vmatprep.subr.mxu0 0.0
      %846 = vmatpush1.xpose.msra.mxu0 0.0
      %847 = vmatprep.subr.mxu0 0.0
      %848 = vmatpush1.xpose.msra.mxu0 0.0
      %849 = vmatprep.subr.mxu0 0.0
      %850 = vmatpush1.xpose.msra.mxu0 0.0
      %851 = vmatprep.subr.mxu0 0.0
      %852 = vmatpush1.xpose.msra.mxu0 0.0
      %853 = vmatprep.subr.mxu0 0.0
      %854 = vmatpush1.xpose.msra.mxu0 0.0
      %855 = vmatprep.subr.mxu0 0.0
      %856 = vmatpush1.xpose.msra.mxu0 0.0
      %857 = vmatprep.subr.mxu0 0.0
      %858 = vmatpush1.xpose.msra.mxu0 0.0
      %859 = vmatprep.mubr.f32.mxu0 0.0
      %860 = vmatmul.mubr.f32.gmra.mrb[0].mxu0 %v748
      %v861 = vpop.f32.mrb[0].mxu0
      %v862 = vadd.f32 0.0, %v861
      %v863 = vpop.f32.mrb[0].mxu0
      %864 = vmatprep.mubr.f32.mxu0 0.0
      %865 = vmatmul.mubr.f32.gmra.mrb[0].mxu0 %v751
      %v866 = vpop.f32.mrb[0].mxu0
      %v867 = vadd.f32 0.0, %v866
      %v868 = vpop.f32.mrb[0].mxu0
      %869 = vmatprep.mubr.f32.mxu0 0.0
      %870 = vmatmul.mubr.f32.gmra.mrb[0].mxu0 %v754
      %v871 = vpop.f32.mrb[0].mxu0
      %v872 = vadd.f32 0.0, %v871
      %v873 = vpop.f32.mrb[0].mxu0
      %874 = vmatprep.mubr.f32.mxu0 0.0
      %875 = vmatmul.mubr.f32.gmra.mrb[0].mxu0 %v757
      %v876 = vpop.f32.mrb[0].mxu0
      %v877 = vadd.f32 0.0, %v876
      %v878 = vpop.f32.mrb[0].mxu0
      %879 = vmatprep.mubr.f32.mxu0 0.0
      %880 = vmatmul.mubr.f32.gmra.mrb[0].mxu0 %v760
      %v881 = vpop.f32.mrb[0].mxu0
      %v882 = vadd.f32 0.0, %v881
      %v883 = vpop.f32.mrb[0].mxu0
      %884 = vmatprep.mubr.f32.mxu0 0.0
      %885 = vmatmul.mubr.f32.gmra.mrb[0].mxu0 %v763
      %v886 = vpop.f32.mrb[0].mxu0
      %v887 = vadd.f32 0.0, %v886
      %v888 = vpop.f32.mrb[0].mxu0
      %889 = vmatprep.mubr.f32.mxu0 0.0
      %890 = vmatmul.mubr.f32.gmra.mrb[0].mxu0 %v766
      %v891 = vpop.f32.mrb[0].mxu0
      %v892 = vadd.f32 0.0, %v891
      %v893 = vpop.f32.mrb[0].mxu0
      %894 = vmatprep.mubr.f32.mxu0 0.0
      %895 = vmatmul.mubr.f32.gmra.mrb[0].mxu0 %v769
      %v896 = vpop.f32.mrb[0].mxu0
      %v897 = vadd.f32 0.0, %v896
      %v898 = vpop.f32.mrb[0].mxu0
      %899 = vmatprep.mubr.f32.mxu0 0.0
      %900 = vmatmul.mubr.f32.gmra.mrb[0].mxu0 %v772
      %v901 = vpop.f32.mrb[0].mxu0
      %v902 = vadd.f32 0.0, %v901
      %v903 = vpop.f32.mrb[0].mxu0
      %904 = vmatprep.mubr.f32.mxu0 0.0
      %905 = vmatmul.mubr.f32.gmra.mrb[0].mxu0 %v775
      %v906 = vpop.f32.mrb[0].mxu0
      %v907 = vadd.f32 0.0, %v906
      %v908 = vpop.f32.mrb[0].mxu0
      %909 = vmatprep.mubr.f32.mxu0 0.0
      %910 = vmatmul.mubr.f32.gmra.mrb[0].mxu0 %v778
      %v911 = vpop.f32.mrb[0].mxu0
      %v912 = vadd.f32 0.0, %v911
      %v913 = vpop.f32.mrb[0].mxu0
      %914 = vmatprep.mubr.f32.mxu0 0.0
      %915 = vmatmul.mubr.f32.gmra.mrb[0].mxu0 %v781
      %v916 = vpop.f32.mrb[0].mxu0
      %v917 = vadd.f32 0.0, %v916
      %v918 = vpop.f32.mrb[0].mxu0
      %919 = vmatprep.mubr.f32.mxu0 0.0
      %920 = vmatmul.mubr.f32.gmra.mrb[0].mxu0 %v784
      %v921 = vpop.f32.mrb[0].mxu0
      %v922 = vadd.f32 0.0, %v921
      %v923 = vpop.f32.mrb[0].mxu0
      %924 = vmatprep.mubr.f32.mxu0 0.0
      %925 = vmatmul.mubr.f32.gmra.mrb[0].mxu0 %v787
      %v926 = vpop.f32.mrb[0].mxu0
      %v927 = vadd.f32 0.0, %v926
      %v928 = vpop.f32.mrb[0].mxu0
      %929 = vmatprep.mubr.f32.mxu0 0.0
      %930 = vmatmul.mubr.f32.gmra.mrb[0].mxu0 %v790
      %v931 = vpop.f32.mrb[0].mxu0
      %v932 = vadd.f32 0.0, %v931
      %v933 = vpop.f32.mrb[0].mxu0
      %934 = vmatprep.mubr.f32.mxu0 0.0
      %935 = vmatmul.mubr.f32.gmra.mrb[0].mxu0 %v793
      %v936 = vpop.f32.mrb[0].mxu0
      %v937 = vadd.f32 0.0, %v936
      %v938 = vpop.f32.mrb[0].mxu0
      %939 = vdwg.mxu0
      %v940 = vsel %vm730, %v862, -1e+30
      %v941 = vsel %vm731, %v867, -1e+30
      %v942 = vsel %vm732, %v872, -1e+30
      %v943 = vsel %vm733, %v877, -1e+30
      %v944 = vsel %vm734, %v882, -1e+30
      %v945 = vsel %vm735, %v887, -1e+30
      %v946 = vsel %vm736, %v892, -1e+30
      %v947 = vsel %vm737, %v897, -1e+30
      %v948 = vsel %vm738, %v902, -1e+30
      %v949 = vsel %vm739, %v907, -1e+30
      %v950 = vsel %vm740, %v912, -1e+30
      %v951 = vsel %vm741, %v917, -1e+30
      %v952 = vsel %vm742, %v922, -1e+30
      %v953 = vsel %vm743, %v927, -1e+30
      %v954 = vsel %vm744, %v932, -1e+30
      %v955 = vsel %vm745, %v937, -1e+30
      %956 = vmax.xlane.f32.xlu0 %v940
      %v957 = vpop.xlane.xlu0 %956
      %958 = vmax.xlane.f32.xlu0 %v941
      %v959 = vpop.xlane.xlu0 %958
      %960 = vmax.xlane.f32.xlu0 %v942
      %v961 = vpop.xlane.xlu0 %960
      %962 = vmax.xlane.f32.xlu0 %v943
      %v963 = vpop.xlane.xlu0 %962
      %964 = vmax.xlane.f32.xlu0 %v944
      %v965 = vpop.xlane.xlu0 %964
      %966 = vmax.xlane.f32.xlu0 %v945
      %v967 = vpop.xlane.xlu0 %966
      %968 = vmax.xlane.f32.xlu0 %v946
      %v969 = vpop.xlane.xlu0 %968
      %970 = vmax.xlane.f32.xlu0 %v947
      %v971 = vpop.xlane.xlu0 %970
      %972 = vmax.xlane.f32.xlu0 %v948
      %v973 = vpop.xlane.xlu0 %972
      %974 = vmax.xlane.f32.xlu0 %v949
      %v975 = vpop.xlane.xlu0 %974
      %976 = vmax.xlane.f32.xlu0 %v950
      %v977 = vpop.xlane.xlu0 %976
      %978 = vmax.xlane.f32.xlu0 %v951
      %v979 = vpop.xlane.xlu0 %978
      %980 = vmax.xlane.f32.xlu0 %v952
      %v981 = vpop.xlane.xlu0 %980
      %982 = vmax.xlane.f32.xlu0 %v953
      %v983 = vpop.xlane.xlu0 %982
      %984 = vmax.xlane.f32.xlu0 %v954
      %v985 = vpop.xlane.xlu0 %984
      %986 = vmax.xlane.f32.xlu0 %v955
      %v987 = vpop.xlane.xlu0 %986
      %v988 = vsub.f32 %v940, %v957
      %v989 = vsub.f32 %v941, %v959
      %v990 = vsub.f32 %v942, %v961
      %v991 = vsub.f32 %v943, %v963
      %v992 = vsub.f32 %v944, %v965
      %v993 = vsub.f32 %v945, %v967
      %v994 = vsub.f32 %v946, %v969
      %v995 = vsub.f32 %v947, %v971
      %v996 = vsub.f32 %v948, %v973
      %v997 = vsub.f32 %v949, %v975
      %v998 = vsub.f32 %v950, %v977
      %v999 = vsub.f32 %v951, %v979
      %v1000 = vsub.f32 %v952, %v981
      %v1001 = vsub.f32 %v953, %v983
      %v1002 = vsub.f32 %v954, %v985
      %v1003 = vsub.f32 %v955, %v987
      %v1004 = vmul.f32 %v988, 1.442695
      %v1005 = vpow.pop %v1004
      %v1006 = vmul.f32 %v989, 1.442695
      %v1007 = vpow.pop %v1006
      %v1008 = vmul.f32 %v990, 1.442695
      %v1009 = vpow.pop %v1008
      %v1010 = vmul.f32 %v991, 1.442695
      %v1011 = vpow.pop %v1010
      %v1012 = vmul.f32 %v992, 1.442695
      %v1013 = vpow.pop %v1012
      %v1014 = vmul.f32 %v993, 1.442695
      %v1015 = vpow.pop %v1014
      %v1016 = vmul.f32 %v994, 1.442695
      %v1017 = vpow.pop %v1016
      %v1018 = vmul.f32 %v995, 1.442695
      %v1019 = vpow.pop %v1018
      %v1020 = vmul.f32 %v996, 1.442695
      %v1021 = vpow.pop %v1020
      %v1022 = vmul.f32 %v997, 1.442695
      %v1023 = vpow.pop %v1022
      %v1024 = vmul.f32 %v998, 1.442695
      %v1025 = vpow.pop %v1024
      %v1026 = vmul.f32 %v999, 1.442695
      %v1027 = vpow.pop %v1026
      %v1028 = vmul.f32 %v1000, 1.442695
      %v1029 = vpow.pop %v1028
      %v1030 = vmul.f32 %v1001, 1.442695
      %v1031 = vpow.pop %v1030
      %v1032 = vmul.f32 %v1002, 1.442695
      %v1033 = vpow.pop %v1032
      %v1034 = vmul.f32 %v1003, 1.442695
      %v1035 = vpow.pop %v1034
      %1036 = vadd.xlane.f32.xlu0 %v1005
      %v1037 = vpop.xlane.xlu0 %1036
      %1038 = vadd.xlane.f32.xlu0 %v1007
      %v1039 = vpop.xlane.xlu0 %1038
      %1040 = vadd.xlane.f32.xlu0 %v1009
      %v1041 = vpop.xlane.xlu0 %1040
      %1042 = vadd.xlane.f32.xlu0 %v1011
      %v1043 = vpop.xlane.xlu0 %1042
      %1044 = vadd.xlane.f32.xlu0 %v1013
      %v1045 = vpop.xlane.xlu0 %1044
      %1046 = vadd.xlane.f32.xlu0 %v1015
      %v1047 = vpop.xlane.xlu0 %1046
      %1048 = vadd.xlane.f32.xlu0 %v1017
      %v1049 = vpop.xlane.xlu0 %1048
      %1050 = vadd.xlane.f32.xlu0 %v1019
      %v1051 = vpop.xlane.xlu0 %1050
      %1052 = vadd.xlane.f32.xlu0 %v1021
      %v1053 = vpop.xlane.xlu0 %1052
      %1054 = vadd.xlane.f32.xlu0 %v1023
      %v1055 = vpop.xlane.xlu0 %1054
      %1056 = vadd.xlane.f32.xlu0 %v1025
      %v1057 = vpop.xlane.xlu0 %1056
      %1058 = vadd.xlane.f32.xlu0 %v1027
      %v1059 = vpop.xlane.xlu0 %1058
      %1060 = vadd.xlane.f32.xlu0 %v1029
      %v1061 = vpop.xlane.xlu0 %1060
      %1062 = vadd.xlane.f32.xlu0 %v1031
      %v1063 = vpop.xlane.xlu0 %1062
      %1064 = vadd.xlane.f32.xlu0 %v1033
      %v1065 = vpop.xlane.xlu0 %1064
      %1066 = vadd.xlane.f32.xlu0 %v1035
      %v1067 = vpop.xlane.xlu0 %1066
      %v1068 = vrcp.pop %v1037
      %v1069 = vrcp.pop %v1039
      %v1070 = vrcp.pop %v1041
      %v1071 = vrcp.pop %v1043
      %v1072 = vrcp.pop %v1045
      %v1073 = vrcp.pop %v1047
      %v1074 = vrcp.pop %v1049
      %v1075 = vrcp.pop %v1051
      %v1076 = vrcp.pop %v1053
      %v1077 = vrcp.pop %v1055
      %v1078 = vrcp.pop %v1057
      %v1079 = vrcp.pop %v1059
      %v1080 = vrcp.pop %v1061
      %v1081 = vrcp.pop %v1063
      %v1082 = vrcp.pop %v1065
      %v1083 = vrcp.pop %v1067
      %v1084 = vmul.f32 %v1005, %v1068
      %v1085 = vmul.f32 %v1007, %v1069
      %v1086 = vmul.f32 %v1009, %v1070
      %v1087 = vmul.f32 %v1011, %v1071
      %v1088 = vmul.f32 %v1013, %v1072
      %v1089 = vmul.f32 %v1015, %v1073
      %v1090 = vmul.f32 %v1017, %v1074
      %v1091 = vmul.f32 %v1019, %v1075
      %v1092 = vmul.f32 %v1021, %v1076
      %v1093 = vmul.f32 %v1023, %v1077
      %v1094 = vmul.f32 %v1025, %v1078
      %v1095 = vmul.f32 %v1027, %v1079
      %v1096 = vmul.f32 %v1029, %v1080
      %v1097 = vmul.f32 %v1031, %v1081
      %v1098 = vmul.f32 %v1033, %v1082
      %v1099 = vmul.f32 %v1035, %v1083
      %1100 = vmatprep.subr.mxu0 0.0
      %1101 = vmatpush1.xpose.msra.mxu0 %v1084
      %1102 = vmatprep.subr.mxu0 0.0
      %1103 = vmatpush1.xpose.msra.mxu0 %v1085
      %1104 = vmatprep.subr.mxu0 0.0
      %1105 = vmatpush1.xpose.msra.mxu0 %v1086
      %1106 = vmatprep.subr.mxu0 0.0
      %1107 = vmatpush1.xpose.msra.mxu0 %v1087
      %1108 = vmatprep.subr.mxu0 0.0
      %1109 = vmatpush1.xpose.msra.mxu0 %v1088
      %1110 = vmatprep.subr.mxu0 0.0
      %1111 = vmatpush1.xpose.msra.mxu0 %v1089
      %1112 = vmatprep.subr.mxu0 0.0
      %1113 = vmatpush1.xpose.msra.mxu0 %v1090
      %1114 = vmatprep.subr.mxu0 0.0
      %1115 = vmatpush1.xpose.msra.mxu0 %v1091
      %1116 = vmatprep.subr.mxu0 0.0
      %1117 = vmatpush1.xpose.msra.mxu0 %v1092
      %1118 = vmatprep.subr.mxu0 0.0
      %1119 = vmatpush1.xpose.msra.mxu0 %v1093
      %1120 = vmatprep.subr.mxu0 0.0
      %1121 = vmatpush1.xpose.msra.mxu0 %v1094
      %1122 = vmatprep.subr.mxu0 0.0
      %1123 = vmatpush1.xpose.msra.mxu0 %v1095
      %1124 = vmatprep.subr.mxu0 0.0
      %1125 = vmatpush1.xpose.msra.mxu0 %v1096
      %1126 = vmatprep.subr.mxu0 0.0
      %1127 = vmatpush1.xpose.msra.mxu0 %v1097
      %1128 = vmatprep.subr.mxu0 0.0
      %1129 = vmatpush1.xpose.msra.mxu0 %v1098
      %1130 = vmatprep.subr.mxu0 0.0
      %1131 = vmatpush1.xpose.msra.mxu0 %v1099
      %1132 = vmatprep.subr.mxu0 0.0
      %1133 = vmatpush1.xpose.msra.mxu0 0.0
      %1134 = vmatprep.subr.mxu0 0.0
      %1135 = vmatpush1.xpose.msra.mxu0 0.0
      %1136 = vmatprep.subr.mxu0 0.0
      %1137 = vmatpush1.xpose.msra.mxu0 0.0
      %1138 = vmatprep.subr.mxu0 0.0
      %1139 = vmatpush1.xpose.msra.mxu0 0.0
      %1140 = vmatprep.subr.mxu0 0.0
      %1141 = vmatpush1.xpose.msra.mxu0 0.0
      %1142 = vmatprep.subr.mxu0 0.0
      %1143 = vmatpush1.xpose.msra.mxu0 0.0
      %1144 = vmatprep.subr.mxu0 0.0
      %1145 = vmatpush1.xpose.msra.mxu0 0.0
      %1146 = vmatprep.subr.mxu0 0.0
      %1147 = vmatpush1.xpose.msra.mxu0 0.0
      %1148 = vmatprep.subr.mxu0 0.0
      %1149 = vmatpush1.xpose.msra.mxu0 0.0
      %1150 = vmatprep.subr.mxu0 0.0
      %1151 = vmatpush1.xpose.msra.mxu0 0.0
      %1152 = vmatprep.subr.mxu0 0.0
      %1153 = vmatpush1.xpose.msra.mxu0 0.0
      %1154 = vmatprep.subr.mxu0 0.0
      %1155 = vmatpush1.xpose.msra.mxu0 0.0
      %1156 = vmatprep.subr.mxu0 0.0
      %1157 = vmatpush1.xpose.msra.mxu0 0.0
      %1158 = vmatprep.subr.mxu0 0.0
      %1159 = vmatpush1.xpose.msra.mxu0 0.0
      %1160 = vmatprep.subr.mxu0 0.0
      %1161 = vmatpush1.xpose.msra.mxu0 0.0
      %1162 = vmatprep.subr.mxu0 0.0
      %1163 = vmatpush1.xpose.msra.mxu0 0.0
      %1164 = vmatprep.mubr.f32.mxu0 0.0
      %1165 = vmatmul.mubr.f32.gmra.mrb[0].mxu0 %v658
      %v1166 = vpop.f32.mrb[0].mxu0
      %v1167 = vadd.f32 0.0, %v1166
      %v1168 = vpop.f32.mrb[0].mxu0
      %1169 = vdwg.mxu0
      %1170 = vrot.lane.b32.xlu0 %v503, 126
      %v1171 = vpop.permute.xlu0 %1170
      %1172 = vrot.lane.b32.xlu0 %v508, 126
      %v1173 = vpop.permute.xlu0 %1172
      %1174 = vrot.lane.b32.xlu0 %v513, 126
      %v1175 = vpop.permute.xlu0 %1174
      %1176 = vrot.lane.b32.xlu0 %v518, 126
      %v1177 = vpop.permute.xlu0 %1176
      %1178 = vrot.lane.b32.xlu0 %v523, 126
      %v1179 = vpop.permute.xlu0 %1178
      %1180 = vrot.lane.b32.xlu0 %v528, 126
      %v1181 = vpop.permute.xlu0 %1180
      %1182 = vrot.lane.b32.xlu0 %v533, 126
      %v1183 = vpop.permute.xlu0 %1182
      %1184 = vrot.lane.b32.xlu0 %v538, 126
      %v1185 = vpop.permute.xlu0 %1184
      %1186 = vrot.lane.b32.xlu0 %v543, 126
      %v1187 = vpop.permute.xlu0 %1186
      %1188 = vrot.lane.b32.xlu0 %v548, 126
      %v1189 = vpop.permute.xlu0 %1188
      %1190 = vrot.lane.b32.xlu0 %v553, 126
      %v1191 = vpop.permute.xlu0 %1190
      %1192 = vrot.lane.b32.xlu0 %v558, 126
      %v1193 = vpop.permute.xlu0 %1192
      %1194 = vrot.lane.b32.xlu0 %v563, 126
      %v1195 = vpop.permute.xlu0 %1194
      %1196 = vrot.lane.b32.xlu0 %v568, 126
      %v1197 = vpop.permute.xlu0 %1196
      %1198 = vrot.lane.b32.xlu0 %v573, 126
      %v1199 = vpop.permute.xlu0 %1198
      %1200 = vrot.lane.b32.xlu0 %v578, 126
      %v1201 = vpop.permute.xlu0 %1200
      %v1202 = vsel %vm746, %v1171, 0
      %v1204 = vsel %vm746, %v1173, 0
      %v1206 = vsel %vm746, %v1175, 0
      %v1208 = vsel %vm746, %v1177, 0
      %v1210 = vsel %vm746, %v1179, 0
      %v1212 = vsel %vm746, %v1181, 0
      %v1214 = vsel %vm746, %v1183, 0
      %v1216 = vsel %vm746, %v1185, 0
      %v1218 = vsel %vm746, %v1187, 0
      %v1220 = vsel %vm746, %v1189, 0
      %v1222 = vsel %vm746, %v1191, 0
      %v1224 = vsel %vm746, %v1193, 0
      %v1226 = vsel %vm746, %v1195, 0
      %v1228 = vsel %vm746, %v1197, 0
      %v1230 = vsel %vm746, %v1199, 0
      %v1232 = vsel %vm746, %v1201, 0
      %1234 = vmatprep.subr.mxu0 0.0
      %1235 = vmatpush1.xpose.msra.mxu0 %v1202
      %1236 = vmatprep.subr.mxu0 0.0
      %1237 = vmatpush1.xpose.msra.mxu0 %v1204
      %1238 = vmatprep.subr.mxu0 0.0
      %1239 = vmatpush1.xpose.msra.mxu0 %v1206
      %1240 = vmatprep.subr.mxu0 0.0
      %1241 = vmatpush1.xpose.msra.mxu0 %v1208
      %1242 = vmatprep.subr.mxu0 0.0
      %1243 = vmatpush1.xpose.msra.mxu0 %v1210
      %1244 = vmatprep.subr.mxu0 0.0
      %1245 = vmatpush1.xpose.msra.mxu0 %v1212
      %1246 = vmatprep.subr.mxu0 0.0
      %1247 = vmatpush1.xpose.msra.mxu0 %v1214
      %1248 = vmatprep.subr.mxu0 0.0
      %1249 = vmatpush1.xpose.msra.mxu0 %v1216
      %1250 = vmatprep.subr.mxu0 0.0
      %1251 = vmatpush1.xpose.msra.mxu0 %v1218
      %1252 = vmatprep.subr.mxu0 0.0
      %1253 = vmatpush1.xpose.msra.mxu0 %v1220
      %1254 = vmatprep.subr.mxu0 0.0
      %1255 = vmatpush1.xpose.msra.mxu0 %v1222
      %1256 = vmatprep.subr.mxu0 0.0
      %1257 = vmatpush1.xpose.msra.mxu0 %v1224
      %1258 = vmatprep.subr.mxu0 0.0
      %1259 = vmatpush1.xpose.msra.mxu0 %v1226
      %1260 = vmatprep.subr.mxu0 0.0
      %1261 = vmatpush1.xpose.msra.mxu0 %v1228
      %1262 = vmatprep.subr.mxu0 0.0
      %1263 = vmatpush1.xpose.msra.mxu0 %v1230
      %1264 = vmatprep.subr.mxu0 0.0
      %1265 = vmatpush1.xpose.msra.mxu0 %v1232
      %1266 = vmatprep.subr.mxu0 0.0
      %1267 = vmatpush1.xpose.msra.mxu0 0.0
      %1268 = vmatprep.subr.mxu0 0.0
      %1269 = vmatpush1.xpose.msra.mxu0 0.0
      %1270 = vmatprep.subr.mxu0 0.0
      %1271 = vmatpush1.xpose.msra.mxu0 0.0
      %1272 = vmatprep.subr.mxu0 0.0
      %1273 = vmatpush1.xpose.msra.mxu0 0.0
      %1274 = vmatprep.subr.mxu0 0.0
      %1275 = vmatpush1.xpose.msra.mxu0 0.0
      %1276 = vmatprep.subr.mxu0 0.0
      %1277 = vmatpush1.xpose.msra.mxu0 0.0
      %1278 = vmatprep.subr.mxu0 0.0
      %1279 = vmatpush1.xpose.msra.mxu0 0.0
      %1280 = vmatprep.subr.mxu0 0.0
      %1281 = vmatpush1.xpose.msra.mxu0 0.0
      %1282 = vmatprep.subr.mxu0 0.0
      %1283 = vmatpush1.xpose.msra.mxu0 0.0
      %1284 = vmatprep.subr.mxu0 0.0
      %1285 = vmatpush1.xpose.msra.mxu0 0.0
      %1286 = vmatprep.subr.mxu0 0.0
      %1287 = vmatpush1.xpose.msra.mxu0 0.0
      %1288 = vmatprep.subr.mxu0 0.0
      %1289 = vmatpush1.xpose.msra.mxu0 0.0
      %1290 = vmatprep.subr.mxu0 0.0
      %1291 = vmatpush1.xpose.msra.mxu0 0.0
      %1292 = vmatprep.subr.mxu0 0.0
      %1293 = vmatpush1.xpose.msra.mxu0 0.0
      %1294 = vmatprep.subr.mxu0 0.0
      %1295 = vmatpush1.xpose.msra.mxu0 0.0
      %1296 = vmatprep.subr.mxu0 0.0
      %1297 = vmatpush1.xpose.msra.mxu0 0.0
      %1298 = vmatprep.mubr.f32.mxu0 0.0
      %1299 = vmatmul.mubr.f32.gmra.mrb[0].mxu0 %v1202
      %v1300 = vpop.f32.mrb[0].mxu0
      %v1301 = vadd.f32 0.0, %v1300
      %v1302 = vpop.f32.mrb[0].mxu0
      %1303 = vmatprep.mubr.f32.mxu0 0.0
      %1304 = vmatmul.mubr.f32.gmra.mrb[0].mxu0 %v1204
      %v1305 = vpop.f32.mrb[0].mxu0
      %v1306 = vadd.f32 0.0, %v1305
      %v1307 = vpop.f32.mrb[0].mxu0
      %1308 = vmatprep.mubr.f32.mxu0 0.0
      %1309 = vmatmul.mubr.f32.gmra.mrb[0].mxu0 %v1206
      %v1310 = vpop.f32.mrb[0].mxu0
      %v1311 = vadd.f32 0.0, %v1310
      %v1312 = vpop.f32.mrb[0].mxu0
      %1313 = vmatprep.mubr.f32.mxu0 0.0
      %1314 = vmatmul.mubr.f32.gmra.mrb[0].mxu0 %v1208
      %v1315 = vpop.f32.mrb[0].mxu0
      %v1316 = vadd.f32 0.0, %v1315
      %v1317 = vpop.f32.mrb[0].mxu0
      %1318 = vmatprep.mubr.f32.mxu0 0.0
      %1319 = vmatmul.mubr.f32.gmra.mrb[0].mxu0 %v1210
      %v1320 = vpop.f32.mrb[0].mxu0
      %v1321 = vadd.f32 0.0, %v1320
      %v1322 = vpop.f32.mrb[0].mxu0
      %1323 = vmatprep.mubr.f32.mxu0 0.0
      %1324 = vmatmul.mubr.f32.gmra.mrb[0].mxu0 %v1212
      %v1325 = vpop.f32.mrb[0].mxu0
      %v1326 = vadd.f32 0.0, %v1325
      %v1327 = vpop.f32.mrb[0].mxu0
      %1328 = vmatprep.mubr.f32.mxu0 0.0
      %1329 = vmatmul.mubr.f32.gmra.mrb[0].mxu0 %v1214
      %v1330 = vpop.f32.mrb[0].mxu0
      %v1331 = vadd.f32 0.0, %v1330
      %v1332 = vpop.f32.mrb[0].mxu0
      %1333 = vmatprep.mubr.f32.mxu0 0.0
      %1334 = vmatmul.mubr.f32.gmra.mrb[0].mxu0 %v1216
      %v1335 = vpop.f32.mrb[0].mxu0
      %v1336 = vadd.f32 0.0, %v1335
      %v1337 = vpop.f32.mrb[0].mxu0
      %1338 = vmatprep.mubr.f32.mxu0 0.0
      %1339 = vmatmul.mubr.f32.gmra.mrb[0].mxu0 %v1218
      %v1340 = vpop.f32.mrb[0].mxu0
      %v1341 = vadd.f32 0.0, %v1340
      %v1342 = vpop.f32.mrb[0].mxu0
      %1343 = vmatprep.mubr.f32.mxu0 0.0
      %1344 = vmatmul.mubr.f32.gmra.mrb[0].mxu0 %v1220
      %v1345 = vpop.f32.mrb[0].mxu0
      %v1346 = vadd.f32 0.0, %v1345
      %v1347 = vpop.f32.mrb[0].mxu0
      %1348 = vmatprep.mubr.f32.mxu0 0.0
      %1349 = vmatmul.mubr.f32.gmra.mrb[0].mxu0 %v1222
      %v1350 = vpop.f32.mrb[0].mxu0
      %v1351 = vadd.f32 0.0, %v1350
      %v1352 = vpop.f32.mrb[0].mxu0
      %1353 = vmatprep.mubr.f32.mxu0 0.0
      %1354 = vmatmul.mubr.f32.gmra.mrb[0].mxu0 %v1224
      %v1355 = vpop.f32.mrb[0].mxu0
      %v1356 = vadd.f32 0.0, %v1355
      %v1357 = vpop.f32.mrb[0].mxu0
      %1358 = vmatprep.mubr.f32.mxu0 0.0
      %1359 = vmatmul.mubr.f32.gmra.mrb[0].mxu0 %v1226
      %v1360 = vpop.f32.mrb[0].mxu0
      %v1361 = vadd.f32 0.0, %v1360
      %v1362 = vpop.f32.mrb[0].mxu0
      %1363 = vmatprep.mubr.f32.mxu0 0.0
      %1364 = vmatmul.mubr.f32.gmra.mrb[0].mxu0 %v1228
      %v1365 = vpop.f32.mrb[0].mxu0
      %v1366 = vadd.f32 0.0, %v1365
      %v1367 = vpop.f32.mrb[0].mxu0
      %1368 = vmatprep.mubr.f32.mxu0 0.0
      %1369 = vmatmul.mubr.f32.gmra.mrb[0].mxu0 %v1230
      %v1370 = vpop.f32.mrb[0].mxu0
      %v1371 = vadd.f32 0.0, %v1370
      %v1372 = vpop.f32.mrb[0].mxu0
      %1373 = vmatprep.mubr.f32.mxu0 0.0
      %1374 = vmatmul.mubr.f32.gmra.mrb[0].mxu0 %v1232
      %v1375 = vpop.f32.mrb[0].mxu0
      %v1376 = vadd.f32 0.0, %v1375
      %v1377 = vpop.f32.mrb[0].mxu0
      %1378 = vdwg.mxu0
      %v1379 = vsel %vm730, %v1301, -1e+30
      %v1380 = vsel %vm731, %v1306, -1e+30
      %v1381 = vsel %vm732, %v1311, -1e+30
      %v1382 = vsel %vm733, %v1316, -1e+30
      %v1383 = vsel %vm734, %v1321, -1e+30
      %v1384 = vsel %vm735, %v1326, -1e+30
      %v1385 = vsel %vm736, %v1331, -1e+30
      %v1386 = vsel %vm737, %v1336, -1e+30
      %v1387 = vsel %vm738, %v1341, -1e+30
      %v1388 = vsel %vm739, %v1346, -1e+30
      %v1389 = vsel %vm740, %v1351, -1e+30
      %v1390 = vsel %vm741, %v1356, -1e+30
      %v1391 = vsel %vm742, %v1361, -1e+30
      %v1392 = vsel %vm743, %v1366, -1e+30
      %v1393 = vsel %vm744, %v1371, -1e+30
      %v1394 = vsel %vm745, %v1376, -1e+30
      %1395 = vmax.xlane.f32.xlu0 %v1379
      %v1396 = vpop.xlane.xlu0 %1395
      %1397 = vmax.xlane.f32.xlu0 %v1380
      %v1398 = vpop.xlane.xlu0 %1397
      %1399 = vmax.xlane.f32.xlu0 %v1381
      %v1400 = vpop.xlane.xlu0 %1399
      %1401 = vmax.xlane.f32.xlu0 %v1382
      %v1402 = vpop.xlane.xlu0 %1401
      %1403 = vmax.xlane.f32.xlu0 %v1383
      %v1404 = vpop.xlane.xlu0 %1403
      %1405 = vmax.xlane.f32.xlu0 %v1384
      %v1406 = vpop.xlane.xlu0 %1405
      %1407 = vmax.xlane.f32.xlu0 %v1385
      %v1408 = vpop.xlane.xlu0 %1407
      %1409 = vmax.xlane.f32.xlu0 %v1386
      %v1410 = vpop.xlane.xlu0 %1409
      %1411 = vmax.xlane.f32.xlu0 %v1387
      %v1412 = vpop.xlane.xlu0 %1411
      %1413 = vmax.xlane.f32.xlu0 %v1388
      %v1414 = vpop.xlane.xlu0 %1413
      %1415 = vmax.xlane.f32.xlu0 %v1389
      %v1416 = vpop.xlane.xlu0 %1415
      %1417 = vmax.xlane.f32.xlu0 %v1390
      %v1418 = vpop.xlane.xlu0 %1417
      %1419 = vmax.xlane.f32.xlu0 %v1391
      %v1420 = vpop.xlane.xlu0 %1419
      %1421 = vmax.xlane.f32.xlu0 %v1392
      %v1422 = vpop.xlane.xlu0 %1421
      %1423 = vmax.xlane.f32.xlu0 %v1393
      %v1424 = vpop.xlane.xlu0 %1423
      %1425 = vmax.xlane.f32.xlu0 %v1394
      %v1426 = vpop.xlane.xlu0 %1425
      %v1427 = vsub.f32 %v1379, %v1396
      %v1428 = vsub.f32 %v1380, %v1398
      %v1429 = vsub.f32 %v1381, %v1400
      %v1430 = vsub.f32 %v1382, %v1402
      %v1431 = vsub.f32 %v1383, %v1404
      %v1432 = vsub.f32 %v1384, %v1406
      %v1433 = vsub.f32 %v1385, %v1408
      %v1434 = vsub.f32 %v1386, %v1410
      %v1435 = vsub.f32 %v1387, %v1412
      %v1436 = vsub.f32 %v1388, %v1414
      %v1437 = vsub.f32 %v1389, %v1416
      %v1438 = vsub.f32 %v1390, %v1418
      %v1439 = vsub.f32 %v1391, %v1420
      %v1440 = vsub.f32 %v1392, %v1422
      %v1441 = vsub.f32 %v1393, %v1424
      %v1442 = vsub.f32 %v1394, %v1426
      %v1443 = vmul.f32 %v1427, 1.442695
      %v1444 = vpow.pop %v1443
      %v1445 = vmul.f32 %v1428, 1.442695
      %v1446 = vpow.pop %v1445
      %v1447 = vmul.f32 %v1429, 1.442695
      %v1448 = vpow.pop %v1447
      %v1449 = vmul.f32 %v1430, 1.442695
      %v1450 = vpow.pop %v1449
      %v1451 = vmul.f32 %v1431, 1.442695
      %v1452 = vpow.pop %v1451
      %v1453 = vmul.f32 %v1432, 1.442695
      %v1454 = vpow.pop %v1453
      %v1455 = vmul.f32 %v1433, 1.442695
      %v1456 = vpow.pop %v1455
      %v1457 = vmul.f32 %v1434, 1.442695
      %v1458 = vpow.pop %v1457
      %v1459 = vmul.f32 %v1435, 1.442695
      %v1460 = vpow.pop %v1459
      %v1461 = vmul.f32 %v1436, 1.442695
      %v1462 = vpow.pop %v1461
      %v1463 = vmul.f32 %v1437, 1.442695
      %v1464 = vpow.pop %v1463
      %v1465 = vmul.f32 %v1438, 1.442695
      %v1466 = vpow.pop %v1465
      %v1467 = vmul.f32 %v1439, 1.442695
      %v1468 = vpow.pop %v1467
      %v1469 = vmul.f32 %v1440, 1.442695
      %v1470 = vpow.pop %v1469
      %v1471 = vmul.f32 %v1441, 1.442695
      %v1472 = vpow.pop %v1471
      %v1473 = vmul.f32 %v1442, 1.442695
      %v1474 = vpow.pop %v1473
      %1475 = vadd.xlane.f32.xlu0 %v1444
      %v1476 = vpop.xlane.xlu0 %1475
      %1477 = vadd.xlane.f32.xlu0 %v1446
      %v1478 = vpop.xlane.xlu0 %1477
      %1479 = vadd.xlane.f32.xlu0 %v1448
      %v1480 = vpop.xlane.xlu0 %1479
      %1481 = vadd.xlane.f32.xlu0 %v1450
      %v1482 = vpop.xlane.xlu0 %1481
      %1483 = vadd.xlane.f32.xlu0 %v1452
      %v1484 = vpop.xlane.xlu0 %1483
      %1485 = vadd.xlane.f32.xlu0 %v1454
      %v1486 = vpop.xlane.xlu0 %1485
      %1487 = vadd.xlane.f32.xlu0 %v1456
      %v1488 = vpop.xlane.xlu0 %1487
      %1489 = vadd.xlane.f32.xlu0 %v1458
      %v1490 = vpop.xlane.xlu0 %1489
      %1491 = vadd.xlane.f32.xlu0 %v1460
      %v1492 = vpop.xlane.xlu0 %1491
      %1493 = vadd.xlane.f32.xlu0 %v1462
      %v1494 = vpop.xlane.xlu0 %1493
      %1495 = vadd.xlane.f32.xlu0 %v1464
      %v1496 = vpop.xlane.xlu0 %1495
      %1497 = vadd.xlane.f32.xlu0 %v1466
      %v1498 = vpop.xlane.xlu0 %1497
      %1499 = vadd.xlane.f32.xlu0 %v1468
      %v1500 = vpop.xlane.xlu0 %1499
      %1501 = vadd.xlane.f32.xlu0 %v1470
      %v1502 = vpop.xlane.xlu0 %1501
      %1503 = vadd.xlane.f32.xlu0 %v1472
      %v1504 = vpop.xlane.xlu0 %1503
      %1505 = vadd.xlane.f32.xlu0 %v1474
      %v1506 = vpop.xlane.xlu0 %1505
      %v1507 = vrcp.pop %v1476
      %v1508 = vrcp.pop %v1478
      %v1509 = vrcp.pop %v1480
      %v1510 = vrcp.pop %v1482
      %v1511 = vrcp.pop %v1484
      %v1512 = vrcp.pop %v1486
      %v1513 = vrcp.pop %v1488
      %v1514 = vrcp.pop %v1490
      %v1515 = vrcp.pop %v1492
      %v1516 = vrcp.pop %v1494
      %v1517 = vrcp.pop %v1496
      %v1518 = vrcp.pop %v1498
      %v1519 = vrcp.pop %v1500
      %v1520 = vrcp.pop %v1502
      %v1521 = vrcp.pop %v1504
      %v1522 = vrcp.pop %v1506
      %v1523 = vmul.f32 %v1444, %v1507
      %v1524 = vmul.f32 %v1446, %v1508
      %v1525 = vmul.f32 %v1448, %v1509
      %v1526 = vmul.f32 %v1450, %v1510
      %v1527 = vmul.f32 %v1452, %v1511
      %v1528 = vmul.f32 %v1454, %v1512
      %v1529 = vmul.f32 %v1456, %v1513
      %v1530 = vmul.f32 %v1458, %v1514
      %v1531 = vmul.f32 %v1460, %v1515
      %v1532 = vmul.f32 %v1462, %v1516
      %v1533 = vmul.f32 %v1464, %v1517
      %v1534 = vmul.f32 %v1466, %v1518
      %v1535 = vmul.f32 %v1468, %v1519
      %v1536 = vmul.f32 %v1470, %v1520
      %v1537 = vmul.f32 %v1472, %v1521
      %v1538 = vmul.f32 %v1474, %v1522
      %v1540 = vrot.slane %v658, 2
      %1542 = vmatprep.subr.mxu0 0.0
      %1543 = vmatpush1.xpose.msra.mxu0 %v1523
      %1544 = vmatprep.subr.mxu0 0.0
      %1545 = vmatpush1.xpose.msra.mxu0 %v1524
      %1546 = vmatprep.subr.mxu0 0.0
      %1547 = vmatpush1.xpose.msra.mxu0 %v1525
      %1548 = vmatprep.subr.mxu0 0.0
      %1549 = vmatpush1.xpose.msra.mxu0 %v1526
      %1550 = vmatprep.subr.mxu0 0.0
      %1551 = vmatpush1.xpose.msra.mxu0 %v1527
      %1552 = vmatprep.subr.mxu0 0.0
      %1553 = vmatpush1.xpose.msra.mxu0 %v1528
      %1554 = vmatprep.subr.mxu0 0.0
      %1555 = vmatpush1.xpose.msra.mxu0 %v1529
      %1556 = vmatprep.subr.mxu0 0.0
      %1557 = vmatpush1.xpose.msra.mxu0 %v1530
      %1558 = vmatprep.subr.mxu0 0.0
      %1559 = vmatpush1.xpose.msra.mxu0 %v1531
      %1560 = vmatprep.subr.mxu0 0.0
      %1561 = vmatpush1.xpose.msra.mxu0 %v1532
      %1562 = vmatprep.subr.mxu0 0.0
      %1563 = vmatpush1.xpose.msra.mxu0 %v1533
      %1564 = vmatprep.subr.mxu0 0.0
      %1565 = vmatpush1.xpose.msra.mxu0 %v1534
      %1566 = vmatprep.subr.mxu0 0.0
      %1567 = vmatpush1.xpose.msra.mxu0 %v1535
      %1568 = vmatprep.subr.mxu0 0.0
      %1569 = vmatpush1.xpose.msra.mxu0 %v1536
      %1570 = vmatprep.subr.mxu0 0.0
      %1571 = vmatpush1.xpose.msra.mxu0 %v1537
      %1572 = vmatprep.subr.mxu0 0.0
      %1573 = vmatpush1.xpose.msra.mxu0 %v1538
      %1574 = vmatprep.subr.mxu0 0.0
      %1575 = vmatpush1.xpose.msra.mxu0 0.0
      %1576 = vmatprep.subr.mxu0 0.0
      %1577 = vmatpush1.xpose.msra.mxu0 0.0
      %1578 = vmatprep.subr.mxu0 0.0
      %1579 = vmatpush1.xpose.msra.mxu0 0.0
      %1580 = vmatprep.subr.mxu0 0.0
      %1581 = vmatpush1.xpose.msra.mxu0 0.0
      %1582 = vmatprep.subr.mxu0 0.0
      %1583 = vmatpush1.xpose.msra.mxu0 0.0
      %1584 = vmatprep.subr.mxu0 0.0
      %1585 = vmatpush1.xpose.msra.mxu0 0.0
      %1586 = vmatprep.subr.mxu0 0.0
      %1587 = vmatpush1.xpose.msra.mxu0 0.0
      %1588 = vmatprep.subr.mxu0 0.0
      %1589 = vmatpush1.xpose.msra.mxu0 0.0
      %1590 = vmatprep.subr.mxu0 0.0
      %1591 = vmatpush1.xpose.msra.mxu0 0.0
      %1592 = vmatprep.subr.mxu0 0.0
      %1593 = vmatpush1.xpose.msra.mxu0 0.0
      %1594 = vmatprep.subr.mxu0 0.0
      %1595 = vmatpush1.xpose.msra.mxu0 0.0
      %1596 = vmatprep.subr.mxu0 0.0
      %1597 = vmatpush1.xpose.msra.mxu0 0.0
      %1598 = vmatprep.subr.mxu0 0.0
      %1599 = vmatpush1.xpose.msra.mxu0 0.0
      %1600 = vmatprep.subr.mxu0 0.0
      %1601 = vmatpush1.xpose.msra.mxu0 0.0
      %1602 = vmatprep.subr.mxu0 0.0
      %1603 = vmatpush1.xpose.msra.mxu0 0.0
      %1604 = vmatprep.subr.mxu0 0.0
      %1605 = vmatpush1.xpose.msra.mxu0 0.0
      %1606 = vmatprep.mubr.f32.mxu0 0.0
      %1607 = vmatmul.mubr.f32.gmra.mrb[0].mxu0 %v1540
      %v1608 = vpop.f32.mrb[0].mxu0
      %v1609 = vadd.f32 0.0, %v1608
      %v1610 = vpop.f32.mrb[0].mxu0
      %1611 = vdwg.mxu0
      %v1613 = vrot.slane %v1609, 6
      %vm1615 = vcmask 1041408
      %v1616 = vsel %vm1615, %v1167, %v1613
      %1617 = vst [vmem:[%s345] sm:$0xf] %v1616
      %p1618 = scmp.lt.s32.totalorder %s22, 1
      %s1619 = scalar_select %p1618, %s22, 1
      %p1620 = scmp.lt.s32.totalorder %s23, 1
      %s1621 = scalar_select %p1620, %s23, 1
      %s1622 = smul.addr %s1619, 2
      %s1623 = sadd.s32 %s1621, %s1622
      %s1624 = smul.addr %s1623, 4
      %s1625 = scalar_lea.vmem %s7, %s1624
      // Predicated region
      $region49: #{sa_base_4d_pallas.4} parent=47 // pred_check
        %p1626 = pneg %p214
      $region50: #{sa_base_4d_pallas.4} parent=47 // pred_check_branch
        %1628 = sbr.rel (%p1626) target = $region52
      $region51: #{sa_base_4d_pallas.4} parent=47 // pred_region
        _
      $region52: #{sa_base_4d_pallas.4} parent=47 // pred_fallthru
        _
    $region48: #{sa_base_4d_pallas.4} parent=5 // pred_fallthru
      _
    %p1629 = scmp.le.s32.totalorder 2, %s13
    // Predicated region
    $region53: #{sa_base_4d_pallas.4} parent=5 // pred_check
      %p1630 = pneg %p1629
    $region54: #{sa_base_4d_pallas.4} parent=5 // pred_check_branch
      %1632 = sbr.rel (%p1630) target = $region56
    $region55: #{sa_base_4d_pallas.4} parent=5 // pred_region
      %s1633 = ssub.s32 %s13, 2
      // Predicated region
      $region57: #{sa_base_4d_pallas.4} parent=55 // pred_check
        %p1634 = pneg %p220
      $region58: #{sa_base_4d_pallas.4} parent=55 // pred_check_branch
        %1636 = sbr.rel (%p1634) target = $region60
      $region59: #{sa_base_4d_pallas.4} parent=55 // pred_region
        %p1637 = scmp.lt.s32.totalorder %s24, 1
        %s1638 = scalar_select %p1637, %s24, 1
        %p1639 = scmp.lt.s32.totalorder %s25, 1
        %s1640 = scalar_select %p1639, %s25, 1
        %s1641 = smul.addr %s1638, 2
        %s1642 = sadd.s32 %s1640, %s1641
        %s1643 = smul.addr %s1642, 4
        %s1644 = scalar_lea.vmem %s7, %s1643
      $region60: #{sa_base_4d_pallas.4} parent=55 // pred_fallthru
        _
    $region56: #{sa_base_4d_pallas.4} parent=5 // pred_fallthru
      _
  $region6: #{sa_base_4d_pallas.4} parent=0 // loop_footer
    %s17 = sadd.s32 1, %s13
  $region7: #{sa_base_4d_pallas.4} parent=0 // loop_footer_branch
    %12 = sbr.rel target = $region3
  $region8: #{sa_base_4d_pallas.4} parent=0 // loop_exit
    _

</llo_original>
